<compile_context>
chip_gen: v5e
topology: v5e:2x2
jax: 0.10.0
libtpu: 0.0.40
codegen_flags: <defaults>
</compile_context>

<pallas_src>
import functools

import numpy as np
import jax
import jax.numpy as jnp
from jax.experimental import pallas as pl
from jax.experimental.pallas import tpu as pltpu

BINS = 30
MMT = 0.6  # momentum


def _ghmc_kernel(pred_ref, tgt_ref, sel_ref, acc_ref, loss_ref, acc_out_ref,
                 counts_ref, bce_ref, *, batch_size, class_num, packed):
    bt = pl.program_id(0)
    nbt = pl.num_programs(0)

    pred = pred_ref[...]                       # [TR, W] f32 (W = pack_k * C, lane-dense)
    tgt = tgt_ref[...]                         # [TR, W] f32
    TR, W = pred.shape

    # ---- shared elementwise math (single pass over the data) ----------------------
    e = jnp.exp(-jnp.abs(pred))                # exp(-|x|), never overflows
    one_plus_e = 1.0 + e
    # approx=True would move this to the EUP, but could flip a bin assignment on an
    # exact bin edge; kept exact for parity with the reference histogram.
    inv1pe = pl.reciprocal(one_plus_e, approx=False)
    sig = jnp.where(pred >= 0.0, inv1pe, e * inv1pe)            # sigmoid(pred)
    g = jnp.abs(sig - tgt)                                      # in [0, 1]
    # Uniform bins -> direct index; no edge tables / per-bin float compares.
    bin_idx = jnp.minimum((g * BINS).astype(jnp.int32), BINS - 1)            # [TR, W]
    # BCEWithLogitsLoss(reduction='none'), reusing e for the softplus term.
    bce = jnp.maximum(pred, 0.0) - pred * tgt + jnp.log(one_plus_e)          # [TR, W]

    # ---- per-(bin, lane) partial sums, assembled in registers ----------------------
    # Only [TR, W] masks are live; deltas are placed into [BINS, W] register values via
    # row-index selects, then committed with ONE += per scratch (no masked row stores).
    row_id = jax.lax.broadcasted_iota(jnp.int32, (BINS, W), 0)
    cnt_delta = jnp.zeros((BINS, W), jnp.float32)
    bce_delta = jnp.zeros((BINS, W), jnp.float32)
    for i in range(BINS):
        m = (bin_idx == i).astype(jnp.float32)                  # [TR, W]
        crow = jnp.sum(m, axis=0, keepdims=True)                # [1, W] count
        brow = jnp.sum(m * bce, axis=0, keepdims=True)          # [1, W] bce sum
        place = row_id == i                                     # [BINS, W]
        cnt_delta = jnp.where(place, crow, cnt_delta)
        bce_delta = jnp.where(place, brow, bce_delta)

    @pl.when(bt == 0)
    def _init():
        counts_ref[...] = jnp.zeros_like(counts_ref)
        bce_ref[...] = jnp.zeros_like(bce_ref)

    counts_ref[...] = counts_ref[...] + cnt_delta
    bce_ref[...] = bce_ref[...] + bce_delta

    # ---- finalize on the last tile: momentum update, weights, scalar loss ----------
    @pl.when(bt == nbt - 1)
    def _finalize():
        if packed:
            sel = sel_ref[...]                                  # [W, C] lane->class
            counts = jnp.dot(counts_ref[...], sel,
                             preferred_element_type=jnp.float32)            # [BINS, C]
            bce_sum = jnp.dot(bce_ref[...], sel,
                              preferred_element_type=jnp.float32)           # [BINS, C]
        else:
            counts = counts_ref[...]                            # W == C
            bce_sum = bce_ref[...]

        nonempty = counts > 0.0
        acc_new = jnp.where(nonempty,
                            MMT * acc_ref[...] + (1.0 - MMT) * counts,
                            acc_ref[...])
        acc_out_ref[...] = acc_new
        safe = jnp.where(nonempty, acc_new, 1.0)
        wbin = jnp.where(nonempty, jnp.float32(batch_size) / safe, 0.0)      # [BINS, C]
        n_c = jnp.sum(nonempty.astype(jnp.float32), axis=0, keepdims=True)   # [1, C]
        invn = jnp.where(n_c > 0.0, 1.0 / n_c, 1.0)
        # Every element sits in exactly one (non-empty) bin -> weighted loss factors
        # exactly into per-bin BCE sums; no per-element weight gather needed.
        wl = bce_sum * wbin * invn                                           # [BINS, C]
        total = jnp.sum(jnp.sum(wl, axis=0, keepdims=True), axis=1, keepdims=True)
        loss_ref[...] = total * (1.0 / float(batch_size * class_num))


def ghmc_loss(pred, target, acc_sum, *, row_tile=None, pack_k=None):
    """GHMC forward. Returns (loss, updated_acc_sum). acc_sum layout is [class, bins]."""
    pred = pred.astype(jnp.float32)
    target = target.astype(jnp.float32)
    B, C = pred.shape

    # ---- lane packing: fold pack_k batch rows into the lane dim when C is narrow ----
    if pack_k is None:
        pack_k = 1
        if C < 128:
            target_k = max(1, 256 // C)           # aim for ~256 lanes per row
            for k in range(min(target_k, B), 0, -1):
                if B % k == 0:
                    pack_k = k
                    break
    assert B % pack_k == 0, "pack_k must divide batch size"
    R, W = B // pack_k, pack_k * C
    pred_p = pred.reshape(R, W)
    tgt_p = target.reshape(R, W)
    packed = pack_k > 1
    if packed:
        # sel[w, c] = 1 iff lane w belongs to class c (lane layout = (b % k) * C + c).
        sel = jnp.asarray((np.arange(W)[:, None] % C) == np.arange(C)[None, :],
                          dtype=jnp.float32)
    else:
        sel = jnp.zeros((1, 1), jnp.float32)      # placeholder (unused in kernel)

    # ---- VMEM-aware row tiling: 2 inputs x 2 pipeline buffers under a fixed budget ----
    if row_tile is None:
        budget = 8 * 1024 * 1024                  # safe on v7x (64 MiB VMEM) and v5e/v6e
        per_row = 2 * 2 * W * 4
        cap = max(8, budget // per_row)
        if R <= cap:
            row_tile = R
        else:
            row_tile = R                          # fallback: full residency
            t = (min(cap, R) // 8) * 8
            while t >= 8:
                if R % t == 0:
                    row_tile = t
                    break
                t -= 8
    assert R % row_tile == 0 and (row_tile == R or row_tile % 8 == 0)
    nbt = R // row_tile

    # Transpose the stat buffer so class sits on lanes inside the kernel.
    acc_t = acc_sum.astype(jnp.float32).T         # [BINS, C]

    kernel = functools.partial(_ghmc_kernel, batch_size=B, class_num=C, packed=packed)

    grid_spec = pltpu.PrefetchScalarGridSpec(
        num_scalar_prefetch=0,
        grid=(nbt,),                              # batch tiles; carries state -> arbitrary
        in_specs=[
            pl.BlockSpec((row_tile, W), lambda b: (b, 0)),     # pred (packed)
            pl.BlockSpec((row_tile, W), lambda b: (b, 0)),     # target (packed)
            pl.BlockSpec(sel.shape, lambda b: (0, 0)),         # lane->class selector
            pl.BlockSpec((BINS, C), lambda b: (0, 0)),         # acc_sum (resident)
        ],
        out_specs=[
            pl.BlockSpec((1, 1), lambda b: (0, 0)),            # loss (written last step)
            pl.BlockSpec((BINS, C), lambda b: (0, 0)),         # updated acc_sum
        ],
        scratch_shapes=[
            pltpu.VMEM((BINS, W), jnp.float32),   # per-(bin, lane) counts
            pltpu.VMEM((BINS, W), jnp.float32),   # per-(bin, lane) BCE sums
        ],
    )
    loss, acc_new_t = pl.pallas_call(
        kernel,
        grid_spec=grid_spec,
        out_shape=(
            jax.ShapeDtypeStruct((1, 1), jnp.float32),
            jax.ShapeDtypeStruct((BINS, C), jnp.float32),
        ),
        compiler_params=pltpu.CompilerParams(
            dimension_semantics=("arbitrary",),
            vmem_limit_bytes=32 * 1024 * 1024,
        ),
    )(pred_p, tgt_p, sel, acc_t)
    return loss[0, 0], acc_new_t.T


def ghmc_reference(pred, target, acc_sum, bins=BINS, mmt=MMT):
    """NumPy port of the PyTorch forward (loop-for-loop), used as ground truth."""
    pred = np.asarray(pred, np.float32)
    target = np.asarray(target, np.float32)
    acc = np.array(acc_sum, np.float32)
    edges = [float(x) / bins for x in range(bins + 1)]
    edges[-1] += 1e-6
    weights = np.ones_like(pred)
    B, C = target.shape
    g = np.abs(1.0 / (1.0 + np.exp(-pred)) - target)
    n = np.zeros(C)
    for i in range(bins):
        idxs = (g >= edges[i]) & (g < edges[i + 1])
        nib = idxs.sum(0)
        for j in range(C):
            if nib[j] > 0:
                acc[j, i] = mmt * acc[j, i] + (1 - mmt) * nib[j]
                weights[idxs[:, j], j] = B / acc[j, i]
                n[j] += 1
    for j in range(C):
        if n[j] > 0:
            weights[:, j] = weights[:, j] / n[j]
    x, t = pred, target
    bce = np.maximum(x, 0) - x * t + np.log1p(np.exp(-np.abs(x)))
    return (bce * weights).mean(), acc


if __name__ == "__main__":
    key = jax.random.PRNGKey(0)
    k1, k2 = jax.random.split(key)

    batch, attribute_num = 64, 4   # config.dataset_config.attribute_num == class_num
    pred = jax.random.normal(k1, (batch, attribute_num), dtype=jnp.float32)
    target = (jax.random.uniform(k2, (batch, attribute_num)) > 0.5).astype(jnp.float32)
    acc_sum = jnp.zeros((attribute_num, BINS), dtype=jnp.float32)  # module buffer init

    loss_ref, acc_ref_np = ghmc_reference(np.array(pred), np.array(target),
                                          np.array(acc_sum))

    # 1) Forced config: pack 4 rows into lanes (W=16), 8-row tiles -> grid=(2,):
    #    exercises cross-tile histogram/BCE accumulation + packed finalize matmul.
    loss, acc_new = jax.block_until_ready(
        ghmc_loss(pred, target, acc_sum, pack_k=4, row_tile=8))
    assert np.allclose(float(loss), loss_ref, rtol=1e-4, atol=1e-5), (float(loss), loss_ref)
    assert np.allclose(np.array(acc_new), acc_ref_np, rtol=1e-5, atol=1e-5)

    # 2) Default heuristics (full packing, single resident tile).
    loss2, acc_new2 = jax.block_until_ready(ghmc_loss(pred, target, acc_sum))
    assert np.allclose(float(loss2), loss_ref, rtol=1e-4, atol=1e-5), (float(loss2), loss_ref)
    assert np.allclose(np.array(acc_new2), acc_ref_np, rtol=1e-5, atol=1e-5)

    # 3) Unpacked path (pack_k=1, class-on-lanes only), single 64-row tile.
    loss3, acc_new3 = jax.block_until_ready(
        ghmc_loss(pred, target, acc_sum, pack_k=1))
    assert np.allclose(float(loss3), loss_ref, rtol=1e-4, atol=1e-5), (float(loss3), loss_ref)
    assert np.allclose(np.array(acc_new3), acc_ref_np, rtol=1e-5, atol=1e-5)

    print("KERNEL_OK")
</pallas_src>

<mosaic_0001>
module attributes {stable_mosaic.version = 11 : i64} {
  func.func @_ghmc_kernel(%arg0: i32, %arg1: memref<8x16xf32, #tpu.memory_space<vmem>>, %arg2: memref<8x16xf32, #tpu.memory_space<vmem>>, %arg3: memref<16x4xf32, #tpu.memory_space<vmem>>, %arg4: memref<30x4xf32, #tpu.memory_space<vmem>>, %arg5: memref<1x1xf32, #tpu.memory_space<vmem>>, %arg6: memref<30x4xf32, #tpu.memory_space<vmem>>, %arg7: memref<30x16xf32, #tpu.memory_space<vmem>>, %arg8: memref<30x16xf32, #tpu.memory_space<vmem>>) attributes {dimension_semantics = [#tpu.dimension_semantics<arbitrary>], iteration_bounds = array<i64: 2>, scalar_prefetch = 0 : i64, scratch_operands = 2 : i64, tpu.core_type = #tpu.core_type<tc>, window_params = [{transform_indices = @transform_0, window_bounds = array<i64: 8, 16>}, {transform_indices = @transform_1, window_bounds = array<i64: 8, 16>}, {pipeline_mode = #tpu.pipeline_mode<synchronous>, transform_indices = @transform_2, window_bounds = array<i64: 16, 4>}, {pipeline_mode = #tpu.pipeline_mode<synchronous>, transform_indices = @transform_3, window_bounds = array<i64: 30, 4>}, {pipeline_mode = #tpu.pipeline_mode<synchronous>, transform_indices = @transform_4, window_bounds = array<i64: 1, 1>}, {pipeline_mode = #tpu.pipeline_mode<synchronous>, transform_indices = @transform_5, window_bounds = array<i64: 30, 4>}]} {
    %c0 = arith.constant 0 : index
    %c0_0 = arith.constant 0 : index
    %0 = vector.load %arg1[%c0, %c0_0] : memref<8x16xf32, #tpu.memory_space<vmem>>, vector<8x16xf32>
    %c0_1 = arith.constant 0 : index
    %c0_2 = arith.constant 0 : index
    %1 = vector.load %arg2[%c0_1, %c0_2] : memref<8x16xf32, #tpu.memory_space<vmem>>, vector<8x16xf32>
    %2 = math.absf %0 : vector<8x16xf32>
    %cst = arith.constant 0.000000e+00 : f32
    %3 = vector.broadcast %cst : f32 to vector<8x16xf32>
    %4 = arith.subf %3, %2 : vector<8x16xf32>
    %5 = math.exp %4 : vector<8x16xf32>
    %cst_3 = arith.constant 1.000000e+00 : f32
    %6 = vector.broadcast %cst_3 : f32 to vector<8x16xf32>
    %7 = arith.addf %6, %5 : vector<8x16xf32>
    %8 = tpu.reciprocal %7 : vector<8x16xf32> -> vector<8x16xf32>
    %cst_4 = arith.constant 0.000000e+00 : f32
    %9 = vector.broadcast %cst_4 : f32 to vector<8x16xf32>
    %10 = arith.cmpf oge, %0, %9 : vector<8x16xf32>
    %11 = arith.mulf %5, %8 : vector<8x16xf32>
    %12 = arith.select %10, %8, %11 : vector<8x16xi1>, vector<8x16xf32>
    %13 = arith.subf %12, %1 : vector<8x16xf32>
    %14 = math.absf %13 : vector<8x16xf32>
    %cst_5 = arith.constant 3.000000e+01 : f32
    %15 = vector.broadcast %cst_5 : f32 to vector<8x16xf32>
    %16 = arith.mulf %14, %15 : vector<8x16xf32>
    %17 = arith.fptosi %16 : vector<8x16xf32> to vector<8x16xi32>
    %c29_i32 = arith.constant 29 : i32
    %18 = vector.broadcast %c29_i32 : i32 to vector<8x16xi32>
    %19 = arith.minsi %17, %18 : vector<8x16xi32>
    %cst_6 = arith.constant 0.000000e+00 : f32
    %20 = vector.broadcast %cst_6 : f32 to vector<8x16xf32>
    %21 = arith.maximumf %0, %20 : vector<8x16xf32>
    %22 = arith.mulf %0, %1 : vector<8x16xf32>
    %23 = arith.subf %21, %22 : vector<8x16xf32>
    %24 = math.log %7 : vector<8x16xf32>
    %25 = arith.addf %23, %24 : vector<8x16xf32>
    %26 = tpu.iota {dimensions = array<i32: 0>} : vector<30x16xi32>
    %cst_7 = arith.constant 0.000000e+00 : f32
    %27 = vector.broadcast %cst_7 : f32 to vector<30x16xf32>
    %cst_8 = arith.constant 0.000000e+00 : f32
    %28 = vector.broadcast %cst_8 : f32 to vector<30x16xf32>
    %c0_i32 = arith.constant 0 : i32
    %29 = vector.broadcast %c0_i32 : i32 to vector<8x16xi32>
    %30 = arith.cmpi eq, %19, %29 : vector<8x16xi32>
    %31 = arith.extui %30 : vector<8x16xi1> to vector<8x16xi32>
    %32 = arith.sitofp %31 : vector<8x16xi32> to vector<8x16xf32>
    %cst_9 = arith.constant dense<0.000000e+00> : vector<16xf32>
    %33 = vector.multi_reduction <add>, %32, %cst_9 [0] : vector<8x16xf32> to vector<16xf32>
    %34 = vector.shape_cast %33 : vector<16xf32> to vector<1x16xf32>
    %35 = arith.mulf %32, %25 : vector<8x16xf32>
    %cst_10 = arith.constant dense<0.000000e+00> : vector<16xf32>
    %36 = vector.multi_reduction <add>, %35, %cst_10 [0] : vector<8x16xf32> to vector<16xf32>
    %37 = vector.shape_cast %36 : vector<16xf32> to vector<1x16xf32>
    %c0_i32_11 = arith.constant 0 : i32
    %38 = vector.broadcast %c0_i32_11 : i32 to vector<30x16xi32>
    %39 = arith.cmpi eq, %26, %38 : vector<30x16xi32>
    %40 = vector.shape_cast %34 : vector<1x16xf32> to vector<1x16xf32>
    %41 = vector.broadcast %40 : vector<1x16xf32> to vector<30x16xf32>
    %42 = arith.select %39, %41, %27 : vector<30x16xi1>, vector<30x16xf32>
    %43 = vector.shape_cast %37 : vector<1x16xf32> to vector<1x16xf32>
    %44 = vector.broadcast %43 : vector<1x16xf32> to vector<30x16xf32>
    %45 = arith.select %39, %44, %28 : vector<30x16xi1>, vector<30x16xf32>
    %c1_i32 = arith.constant 1 : i32
    %46 = vector.broadcast %c1_i32 : i32 to vector<8x16xi32>
    %47 = arith.cmpi eq, %19, %46 : vector<8x16xi32>
    %48 = arith.extui %47 : vector<8x16xi1> to vector<8x16xi32>
    %49 = arith.sitofp %48 : vector<8x16xi32> to vector<8x16xf32>
    %cst_12 = arith.constant dense<0.000000e+00> : vector<16xf32>
    %50 = vector.multi_reduction <add>, %49, %cst_12 [0] : vector<8x16xf32> to vector<16xf32>
    %51 = vector.shape_cast %50 : vector<16xf32> to vector<1x16xf32>
    %52 = arith.mulf %49, %25 : vector<8x16xf32>
    %cst_13 = arith.constant dense<0.000000e+00> : vector<16xf32>
    %53 = vector.multi_reduction <add>, %52, %cst_13 [0] : vector<8x16xf32> to vector<16xf32>
    %54 = vector.shape_cast %53 : vector<16xf32> to vector<1x16xf32>
    %c1_i32_14 = arith.constant 1 : i32
    %55 = vector.broadcast %c1_i32_14 : i32 to vector<30x16xi32>
    %56 = arith.cmpi eq, %26, %55 : vector<30x16xi32>
    %57 = vector.shape_cast %51 : vector<1x16xf32> to vector<1x16xf32>
    %58 = vector.broadcast %57 : vector<1x16xf32> to vector<30x16xf32>
    %59 = arith.select %56, %58, %42 : vector<30x16xi1>, vector<30x16xf32>
    %60 = vector.shape_cast %54 : vector<1x16xf32> to vector<1x16xf32>
    %61 = vector.broadcast %60 : vector<1x16xf32> to vector<30x16xf32>
    %62 = arith.select %56, %61, %45 : vector<30x16xi1>, vector<30x16xf32>
    %c2_i32 = arith.constant 2 : i32
    %63 = vector.broadcast %c2_i32 : i32 to vector<8x16xi32>
    %64 = arith.cmpi eq, %19, %63 : vector<8x16xi32>
    %65 = arith.extui %64 : vector<8x16xi1> to vector<8x16xi32>
    %66 = arith.sitofp %65 : vector<8x16xi32> to vector<8x16xf32>
    %cst_15 = arith.constant dense<0.000000e+00> : vector<16xf32>
    %67 = vector.multi_reduction <add>, %66, %cst_15 [0] : vector<8x16xf32> to vector<16xf32>
    %68 = vector.shape_cast %67 : vector<16xf32> to vector<1x16xf32>
    %69 = arith.mulf %66, %25 : vector<8x16xf32>
    %cst_16 = arith.constant dense<0.000000e+00> : vector<16xf32>
    %70 = vector.multi_reduction <add>, %69, %cst_16 [0] : vector<8x16xf32> to vector<16xf32>
    %71 = vector.shape_cast %70 : vector<16xf32> to vector<1x16xf32>
    %c2_i32_17 = arith.constant 2 : i32
    %72 = vector.broadcast %c2_i32_17 : i32 to vector<30x16xi32>
    %73 = arith.cmpi eq, %26, %72 : vector<30x16xi32>
    %74 = vector.shape_cast %68 : vector<1x16xf32> to vector<1x16xf32>
    %75 = vector.broadcast %74 : vector<1x16xf32> to vector<30x16xf32>
    %76 = arith.select %73, %75, %59 : vector<30x16xi1>, vector<30x16xf32>
    %77 = vector.shape_cast %71 : vector<1x16xf32> to vector<1x16xf32>
    %78 = vector.broadcast %77 : vector<1x16xf32> to vector<30x16xf32>
    %79 = arith.select %73, %78, %62 : vector<30x16xi1>, vector<30x16xf32>
    %c3_i32 = arith.constant 3 : i32
    %80 = vector.broadcast %c3_i32 : i32 to vector<8x16xi32>
    %81 = arith.cmpi eq, %19, %80 : vector<8x16xi32>
    %82 = arith.extui %81 : vector<8x16xi1> to vector<8x16xi32>
    %83 = arith.sitofp %82 : vector<8x16xi32> to vector<8x16xf32>
    %cst_18 = arith.constant dense<0.000000e+00> : vector<16xf32>
    %84 = vector.multi_reduction <add>, %83, %cst_18 [0] : vector<8x16xf32> to vector<16xf32>
    %85 = vector.shape_cast %84 : vector<16xf32> to vector<1x16xf32>
    %86 = arith.mulf %83, %25 : vector<8x16xf32>
    %cst_19 = arith.constant dense<0.000000e+00> : vector<16xf32>
    %87 = vector.multi_reduction <add>, %86, %cst_19 [0] : vector<8x16xf32> to vector<16xf32>
    %88 = vector.shape_cast %87 : vector<16xf32> to vector<1x16xf32>
    %c3_i32_20 = arith.constant 3 : i32
    %89 = vector.broadcast %c3_i32_20 : i32 to vector<30x16xi32>
    %90 = arith.cmpi eq, %26, %89 : vector<30x16xi32>
    %91 = vector.shape_cast %85 : vector<1x16xf32> to vector<1x16xf32>
    %92 = vector.broadcast %91 : vector<1x16xf32> to vector<30x16xf32>
    %93 = arith.select %90, %92, %76 : vector<30x16xi1>, vector<30x16xf32>
    %94 = vector.shape_cast %88 : vector<1x16xf32> to vector<1x16xf32>
    %95 = vector.broadcast %94 : vector<1x16xf32> to vector<30x16xf32>
    %96 = arith.select %90, %95, %79 : vector<30x16xi1>, vector<30x16xf32>
    %c4_i32 = arith.constant 4 : i32
    %97 = vector.broadcast %c4_i32 : i32 to vector<8x16xi32>
    %98 = arith.cmpi eq, %19, %97 : vector<8x16xi32>
    %99 = arith.extui %98 : vector<8x16xi1> to vector<8x16xi32>
    %100 = arith.sitofp %99 : vector<8x16xi32> to vector<8x16xf32>
    %cst_21 = arith.constant dense<0.000000e+00> : vector<16xf32>
    %101 = vector.multi_reduction <add>, %100, %cst_21 [0] : vector<8x16xf32> to vector<16xf32>
    %102 = vector.shape_cast %101 : vector<16xf32> to vector<1x16xf32>
    %103 = arith.mulf %100, %25 : vector<8x16xf32>
    %cst_22 = arith.constant dense<0.000000e+00> : vector<16xf32>
    %104 = vector.multi_reduction <add>, %103, %cst_22 [0] : vector<8x16xf32> to vector<16xf32>
    %105 = vector.shape_cast %104 : vector<16xf32> to vector<1x16xf32>
    %c4_i32_23 = arith.constant 4 : i32
    %106 = vector.broadcast %c4_i32_23 : i32 to vector<30x16xi32>
    %107 = arith.cmpi eq, %26, %106 : vector<30x16xi32>
    %108 = vector.shape_cast %102 : vector<1x16xf32> to vector<1x16xf32>
    %109 = vector.broadcast %108 : vector<1x16xf32> to vector<30x16xf32>
    %110 = arith.select %107, %109, %93 : vector<30x16xi1>, vector<30x16xf32>
    %111 = vector.shape_cast %105 : vector<1x16xf32> to vector<1x16xf32>
    %112 = vector.broadcast %111 : vector<1x16xf32> to vector<30x16xf32>
    %113 = arith.select %107, %112, %96 : vector<30x16xi1>, vector<30x16xf32>
    %c5_i32 = arith.constant 5 : i32
    %114 = vector.broadcast %c5_i32 : i32 to vector<8x16xi32>
    %115 = arith.cmpi eq, %19, %114 : vector<8x16xi32>
    %116 = arith.extui %115 : vector<8x16xi1> to vector<8x16xi32>
    %117 = arith.sitofp %116 : vector<8x16xi32> to vector<8x16xf32>
    %cst_24 = arith.constant dense<0.000000e+00> : vector<16xf32>
    %118 = vector.multi_reduction <add>, %117, %cst_24 [0] : vector<8x16xf32> to vector<16xf32>
    %119 = vector.shape_cast %118 : vector<16xf32> to vector<1x16xf32>
    %120 = arith.mulf %117, %25 : vector<8x16xf32>
    %cst_25 = arith.constant dense<0.000000e+00> : vector<16xf32>
    %121 = vector.multi_reduction <add>, %120, %cst_25 [0] : vector<8x16xf32> to vector<16xf32>
    %122 = vector.shape_cast %121 : vector<16xf32> to vector<1x16xf32>
    %c5_i32_26 = arith.constant 5 : i32
    %123 = vector.broadcast %c5_i32_26 : i32 to vector<30x16xi32>
    %124 = arith.cmpi eq, %26, %123 : vector<30x16xi32>
    %125 = vector.shape_cast %119 : vector<1x16xf32> to vector<1x16xf32>
    %126 = vector.broadcast %125 : vector<1x16xf32> to vector<30x16xf32>
    %127 = arith.select %124, %126, %110 : vector<30x16xi1>, vector<30x16xf32>
    %128 = vector.shape_cast %122 : vector<1x16xf32> to vector<1x16xf32>
    %129 = vector.broadcast %128 : vector<1x16xf32> to vector<30x16xf32>
    %130 = arith.select %124, %129, %113 : vector<30x16xi1>, vector<30x16xf32>
    %c6_i32 = arith.constant 6 : i32
    %131 = vector.broadcast %c6_i32 : i32 to vector<8x16xi32>
    %132 = arith.cmpi eq, %19, %131 : vector<8x16xi32>
    %133 = arith.extui %132 : vector<8x16xi1> to vector<8x16xi32>
    %134 = arith.sitofp %133 : vector<8x16xi32> to vector<8x16xf32>
    %cst_27 = arith.constant dense<0.000000e+00> : vector<16xf32>
    %135 = vector.multi_reduction <add>, %134, %cst_27 [0] : vector<8x16xf32> to vector<16xf32>
    %136 = vector.shape_cast %135 : vector<16xf32> to vector<1x16xf32>
    %137 = arith.mulf %134, %25 : vector<8x16xf32>
    %cst_28 = arith.constant dense<0.000000e+00> : vector<16xf32>
    %138 = vector.multi_reduction <add>, %137, %cst_28 [0] : vector<8x16xf32> to vector<16xf32>
    %139 = vector.shape_cast %138 : vector<16xf32> to vector<1x16xf32>
    %c6_i32_29 = arith.constant 6 : i32
    %140 = vector.broadcast %c6_i32_29 : i32 to vector<30x16xi32>
    %141 = arith.cmpi eq, %26, %140 : vector<30x16xi32>
    %142 = vector.shape_cast %136 : vector<1x16xf32> to vector<1x16xf32>
    %143 = vector.broadcast %142 : vector<1x16xf32> to vector<30x16xf32>
    %144 = arith.select %141, %143, %127 : vector<30x16xi1>, vector<30x16xf32>
    %145 = vector.shape_cast %139 : vector<1x16xf32> to vector<1x16xf32>
    %146 = vector.broadcast %145 : vector<1x16xf32> to vector<30x16xf32>
    %147 = arith.select %141, %146, %130 : vector<30x16xi1>, vector<30x16xf32>
    %c7_i32 = arith.constant 7 : i32
    %148 = vector.broadcast %c7_i32 : i32 to vector<8x16xi32>
    %149 = arith.cmpi eq, %19, %148 : vector<8x16xi32>
    %150 = arith.extui %149 : vector<8x16xi1> to vector<8x16xi32>
    %151 = arith.sitofp %150 : vector<8x16xi32> to vector<8x16xf32>
    %cst_30 = arith.constant dense<0.000000e+00> : vector<16xf32>
    %152 = vector.multi_reduction <add>, %151, %cst_30 [0] : vector<8x16xf32> to vector<16xf32>
    %153 = vector.shape_cast %152 : vector<16xf32> to vector<1x16xf32>
    %154 = arith.mulf %151, %25 : vector<8x16xf32>
    %cst_31 = arith.constant dense<0.000000e+00> : vector<16xf32>
    %155 = vector.multi_reduction <add>, %154, %cst_31 [0] : vector<8x16xf32> to vector<16xf32>
    %156 = vector.shape_cast %155 : vector<16xf32> to vector<1x16xf32>
    %c7_i32_32 = arith.constant 7 : i32
    %157 = vector.broadcast %c7_i32_32 : i32 to vector<30x16xi32>
    %158 = arith.cmpi eq, %26, %157 : vector<30x16xi32>
    %159 = vector.shape_cast %153 : vector<1x16xf32> to vector<1x16xf32>
    %160 = vector.broadcast %159 : vector<1x16xf32> to vector<30x16xf32>
    %161 = arith.select %158, %160, %144 : vector<30x16xi1>, vector<30x16xf32>
    %162 = vector.shape_cast %156 : vector<1x16xf32> to vector<1x16xf32>
    %163 = vector.broadcast %162 : vector<1x16xf32> to vector<30x16xf32>
    %164 = arith.select %158, %163, %147 : vector<30x16xi1>, vector<30x16xf32>
    %c8_i32 = arith.constant 8 : i32
    %165 = vector.broadcast %c8_i32 : i32 to vector<8x16xi32>
    %166 = arith.cmpi eq, %19, %165 : vector<8x16xi32>
    %167 = arith.extui %166 : vector<8x16xi1> to vector<8x16xi32>
    %168 = arith.sitofp %167 : vector<8x16xi32> to vector<8x16xf32>
    %cst_33 = arith.constant dense<0.000000e+00> : vector<16xf32>
    %169 = vector.multi_reduction <add>, %168, %cst_33 [0] : vector<8x16xf32> to vector<16xf32>
    %170 = vector.shape_cast %169 : vector<16xf32> to vector<1x16xf32>
    %171 = arith.mulf %168, %25 : vector<8x16xf32>
    %cst_34 = arith.constant dense<0.000000e+00> : vector<16xf32>
    %172 = vector.multi_reduction <add>, %171, %cst_34 [0] : vector<8x16xf32> to vector<16xf32>
    %173 = vector.shape_cast %172 : vector<16xf32> to vector<1x16xf32>
    %c8_i32_35 = arith.constant 8 : i32
    %174 = vector.broadcast %c8_i32_35 : i32 to vector<30x16xi32>
    %175 = arith.cmpi eq, %26, %174 : vector<30x16xi32>
    %176 = vector.shape_cast %170 : vector<1x16xf32> to vector<1x16xf32>
    %177 = vector.broadcast %176 : vector<1x16xf32> to vector<30x16xf32>
    %178 = arith.select %175, %177, %161 : vector<30x16xi1>, vector<30x16xf32>
    %179 = vector.shape_cast %173 : vector<1x16xf32> to vector<1x16xf32>
    %180 = vector.broadcast %179 : vector<1x16xf32> to vector<30x16xf32>
    %181 = arith.select %175, %180, %164 : vector<30x16xi1>, vector<30x16xf32>
    %c9_i32 = arith.constant 9 : i32
    %182 = vector.broadcast %c9_i32 : i32 to vector<8x16xi32>
    %183 = arith.cmpi eq, %19, %182 : vector<8x16xi32>
    %184 = arith.extui %183 : vector<8x16xi1> to vector<8x16xi32>
    %185 = arith.sitofp %184 : vector<8x16xi32> to vector<8x16xf32>
    %cst_36 = arith.constant dense<0.000000e+00> : vector<16xf32>
    %186 = vector.multi_reduction <add>, %185, %cst_36 [0] : vector<8x16xf32> to vector<16xf32>
    %187 = vector.shape_cast %186 : vector<16xf32> to vector<1x16xf32>
    %188 = arith.mulf %185, %25 : vector<8x16xf32>
    %cst_37 = arith.constant dense<0.000000e+00> : vector<16xf32>
    %189 = vector.multi_reduction <add>, %188, %cst_37 [0] : vector<8x16xf32> to vector<16xf32>
    %190 = vector.shape_cast %189 : vector<16xf32> to vector<1x16xf32>
    %c9_i32_38 = arith.constant 9 : i32
    %191 = vector.broadcast %c9_i32_38 : i32 to vector<30x16xi32>
    %192 = arith.cmpi eq, %26, %191 : vector<30x16xi32>
    %193 = vector.shape_cast %187 : vector<1x16xf32> to vector<1x16xf32>
    %194 = vector.broadcast %193 : vector<1x16xf32> to vector<30x16xf32>
    %195 = arith.select %192, %194, %178 : vector<30x16xi1>, vector<30x16xf32>
    %196 = vector.shape_cast %190 : vector<1x16xf32> to vector<1x16xf32>
    %197 = vector.broadcast %196 : vector<1x16xf32> to vector<30x16xf32>
    %198 = arith.select %192, %197, %181 : vector<30x16xi1>, vector<30x16xf32>
    %c10_i32 = arith.constant 10 : i32
    %199 = vector.broadcast %c10_i32 : i32 to vector<8x16xi32>
    %200 = arith.cmpi eq, %19, %199 : vector<8x16xi32>
    %201 = arith.extui %200 : vector<8x16xi1> to vector<8x16xi32>
    %202 = arith.sitofp %201 : vector<8x16xi32> to vector<8x16xf32>
    %cst_39 = arith.constant dense<0.000000e+00> : vector<16xf32>
    %203 = vector.multi_reduction <add>, %202, %cst_39 [0] : vector<8x16xf32> to vector<16xf32>
    %204 = vector.shape_cast %203 : vector<16xf32> to vector<1x16xf32>
    %205 = arith.mulf %202, %25 : vector<8x16xf32>
    %cst_40 = arith.constant dense<0.000000e+00> : vector<16xf32>
    %206 = vector.multi_reduction <add>, %205, %cst_40 [0] : vector<8x16xf32> to vector<16xf32>
    %207 = vector.shape_cast %206 : vector<16xf32> to vector<1x16xf32>
    %c10_i32_41 = arith.constant 10 : i32
    %208 = vector.broadcast %c10_i32_41 : i32 to vector<30x16xi32>
    %209 = arith.cmpi eq, %26, %208 : vector<30x16xi32>
    %210 = vector.shape_cast %204 : vector<1x16xf32> to vector<1x16xf32>
    %211 = vector.broadcast %210 : vector<1x16xf32> to vector<30x16xf32>
    %212 = arith.select %209, %211, %195 : vector<30x16xi1>, vector<30x16xf32>
    %213 = vector.shape_cast %207 : vector<1x16xf32> to vector<1x16xf32>
    %214 = vector.broadcast %213 : vector<1x16xf32> to vector<30x16xf32>
    %215 = arith.select %209, %214, %198 : vector<30x16xi1>, vector<30x16xf32>
    %c11_i32 = arith.constant 11 : i32
    %216 = vector.broadcast %c11_i32 : i32 to vector<8x16xi32>
    %217 = arith.cmpi eq, %19, %216 : vector<8x16xi32>
    %218 = arith.extui %217 : vector<8x16xi1> to vector<8x16xi32>
    %219 = arith.sitofp %218 : vector<8x16xi32> to vector<8x16xf32>
    %cst_42 = arith.constant dense<0.000000e+00> : vector<16xf32>
    %220 = vector.multi_reduction <add>, %219, %cst_42 [0] : vector<8x16xf32> to vector<16xf32>
    %221 = vector.shape_cast %220 : vector<16xf32> to vector<1x16xf32>
    %222 = arith.mulf %219, %25 : vector<8x16xf32>
    %cst_43 = arith.constant dense<0.000000e+00> : vector<16xf32>
    %223 = vector.multi_reduction <add>, %222, %cst_43 [0] : vector<8x16xf32> to vector<16xf32>
    %224 = vector.shape_cast %223 : vector<16xf32> to vector<1x16xf32>
    %c11_i32_44 = arith.constant 11 : i32
    %225 = vector.broadcast %c11_i32_44 : i32 to vector<30x16xi32>
    %226 = arith.cmpi eq, %26, %225 : vector<30x16xi32>
    %227 = vector.shape_cast %221 : vector<1x16xf32> to vector<1x16xf32>
    %228 = vector.broadcast %227 : vector<1x16xf32> to vector<30x16xf32>
    %229 = arith.select %226, %228, %212 : vector<30x16xi1>, vector<30x16xf32>
    %230 = vector.shape_cast %224 : vector<1x16xf32> to vector<1x16xf32>
    %231 = vector.broadcast %230 : vector<1x16xf32> to vector<30x16xf32>
    %232 = arith.select %226, %231, %215 : vector<30x16xi1>, vector<30x16xf32>
    %c12_i32 = arith.constant 12 : i32
    %233 = vector.broadcast %c12_i32 : i32 to vector<8x16xi32>
    %234 = arith.cmpi eq, %19, %233 : vector<8x16xi32>
    %235 = arith.extui %234 : vector<8x16xi1> to vector<8x16xi32>
    %236 = arith.sitofp %235 : vector<8x16xi32> to vector<8x16xf32>
    %cst_45 = arith.constant dense<0.000000e+00> : vector<16xf32>
    %237 = vector.multi_reduction <add>, %236, %cst_45 [0] : vector<8x16xf32> to vector<16xf32>
    %238 = vector.shape_cast %237 : vector<16xf32> to vector<1x16xf32>
    %239 = arith.mulf %236, %25 : vector<8x16xf32>
    %cst_46 = arith.constant dense<0.000000e+00> : vector<16xf32>
    %240 = vector.multi_reduction <add>, %239, %cst_46 [0] : vector<8x16xf32> to vector<16xf32>
    %241 = vector.shape_cast %240 : vector<16xf32> to vector<1x16xf32>
    %c12_i32_47 = arith.constant 12 : i32
    %242 = vector.broadcast %c12_i32_47 : i32 to vector<30x16xi32>
    %243 = arith.cmpi eq, %26, %242 : vector<30x16xi32>
    %244 = vector.shape_cast %238 : vector<1x16xf32> to vector<1x16xf32>
    %245 = vector.broadcast %244 : vector<1x16xf32> to vector<30x16xf32>
    %246 = arith.select %243, %245, %229 : vector<30x16xi1>, vector<30x16xf32>
    %247 = vector.shape_cast %241 : vector<1x16xf32> to vector<1x16xf32>
    %248 = vector.broadcast %247 : vector<1x16xf32> to vector<30x16xf32>
    %249 = arith.select %243, %248, %232 : vector<30x16xi1>, vector<30x16xf32>
    %c13_i32 = arith.constant 13 : i32
    %250 = vector.broadcast %c13_i32 : i32 to vector<8x16xi32>
    %251 = arith.cmpi eq, %19, %250 : vector<8x16xi32>
    %252 = arith.extui %251 : vector<8x16xi1> to vector<8x16xi32>
    %253 = arith.sitofp %252 : vector<8x16xi32> to vector<8x16xf32>
    %cst_48 = arith.constant dense<0.000000e+00> : vector<16xf32>
    %254 = vector.multi_reduction <add>, %253, %cst_48 [0] : vector<8x16xf32> to vector<16xf32>
    %255 = vector.shape_cast %254 : vector<16xf32> to vector<1x16xf32>
    %256 = arith.mulf %253, %25 : vector<8x16xf32>
    %cst_49 = arith.constant dense<0.000000e+00> : vector<16xf32>
    %257 = vector.multi_reduction <add>, %256, %cst_49 [0] : vector<8x16xf32> to vector<16xf32>
    %258 = vector.shape_cast %257 : vector<16xf32> to vector<1x16xf32>
    %c13_i32_50 = arith.constant 13 : i32
    %259 = vector.broadcast %c13_i32_50 : i32 to vector<30x16xi32>
    %260 = arith.cmpi eq, %26, %259 : vector<30x16xi32>
    %261 = vector.shape_cast %255 : vector<1x16xf32> to vector<1x16xf32>
    %262 = vector.broadcast %261 : vector<1x16xf32> to vector<30x16xf32>
    %263 = arith.select %260, %262, %246 : vector<30x16xi1>, vector<30x16xf32>
    %264 = vector.shape_cast %258 : vector<1x16xf32> to vector<1x16xf32>
    %265 = vector.broadcast %264 : vector<1x16xf32> to vector<30x16xf32>
    %266 = arith.select %260, %265, %249 : vector<30x16xi1>, vector<30x16xf32>
    %c14_i32 = arith.constant 14 : i32
    %267 = vector.broadcast %c14_i32 : i32 to vector<8x16xi32>
    %268 = arith.cmpi eq, %19, %267 : vector<8x16xi32>
    %269 = arith.extui %268 : vector<8x16xi1> to vector<8x16xi32>
    %270 = arith.sitofp %269 : vector<8x16xi32> to vector<8x16xf32>
    %cst_51 = arith.constant dense<0.000000e+00> : vector<16xf32>
    %271 = vector.multi_reduction <add>, %270, %cst_51 [0] : vector<8x16xf32> to vector<16xf32>
    %272 = vector.shape_cast %271 : vector<16xf32> to vector<1x16xf32>
    %273 = arith.mulf %270, %25 : vector<8x16xf32>
    %cst_52 = arith.constant dense<0.000000e+00> : vector<16xf32>
    %274 = vector.multi_reduction <add>, %273, %cst_52 [0] : vector<8x16xf32> to vector<16xf32>
    %275 = vector.shape_cast %274 : vector<16xf32> to vector<1x16xf32>
    %c14_i32_53 = arith.constant 14 : i32
    %276 = vector.broadcast %c14_i32_53 : i32 to vector<30x16xi32>
    %277 = arith.cmpi eq, %26, %276 : vector<30x16xi32>
    %278 = vector.shape_cast %272 : vector<1x16xf32> to vector<1x16xf32>
    %279 = vector.broadcast %278 : vector<1x16xf32> to vector<30x16xf32>
    %280 = arith.select %277, %279, %263 : vector<30x16xi1>, vector<30x16xf32>
    %281 = vector.shape_cast %275 : vector<1x16xf32> to vector<1x16xf32>
    %282 = vector.broadcast %281 : vector<1x16xf32> to vector<30x16xf32>
    %283 = arith.select %277, %282, %266 : vector<30x16xi1>, vector<30x16xf32>
    %c15_i32 = arith.constant 15 : i32
    %284 = vector.broadcast %c15_i32 : i32 to vector<8x16xi32>
    %285 = arith.cmpi eq, %19, %284 : vector<8x16xi32>
    %286 = arith.extui %285 : vector<8x16xi1> to vector<8x16xi32>
    %287 = arith.sitofp %286 : vector<8x16xi32> to vector<8x16xf32>
    %cst_54 = arith.constant dense<0.000000e+00> : vector<16xf32>
    %288 = vector.multi_reduction <add>, %287, %cst_54 [0] : vector<8x16xf32> to vector<16xf32>
    %289 = vector.shape_cast %288 : vector<16xf32> to vector<1x16xf32>
    %290 = arith.mulf %287, %25 : vector<8x16xf32>
    %cst_55 = arith.constant dense<0.000000e+00> : vector<16xf32>
    %291 = vector.multi_reduction <add>, %290, %cst_55 [0] : vector<8x16xf32> to vector<16xf32>
    %292 = vector.shape_cast %291 : vector<16xf32> to vector<1x16xf32>
    %c15_i32_56 = arith.constant 15 : i32
    %293 = vector.broadcast %c15_i32_56 : i32 to vector<30x16xi32>
    %294 = arith.cmpi eq, %26, %293 : vector<30x16xi32>
    %295 = vector.shape_cast %289 : vector<1x16xf32> to vector<1x16xf32>
    %296 = vector.broadcast %295 : vector<1x16xf32> to vector<30x16xf32>
    %297 = arith.select %294, %296, %280 : vector<30x16xi1>, vector<30x16xf32>
    %298 = vector.shape_cast %292 : vector<1x16xf32> to vector<1x16xf32>
    %299 = vector.broadcast %298 : vector<1x16xf32> to vector<30x16xf32>
    %300 = arith.select %294, %299, %283 : vector<30x16xi1>, vector<30x16xf32>
    %c16_i32 = arith.constant 16 : i32
    %301 = vector.broadcast %c16_i32 : i32 to vector<8x16xi32>
    %302 = arith.cmpi eq, %19, %301 : vector<8x16xi32>
    %303 = arith.extui %302 : vector<8x16xi1> to vector<8x16xi32>
    %304 = arith.sitofp %303 : vector<8x16xi32> to vector<8x16xf32>
    %cst_57 = arith.constant dense<0.000000e+00> : vector<16xf32>
    %305 = vector.multi_reduction <add>, %304, %cst_57 [0] : vector<8x16xf32> to vector<16xf32>
    %306 = vector.shape_cast %305 : vector<16xf32> to vector<1x16xf32>
    %307 = arith.mulf %304, %25 : vector<8x16xf32>
    %cst_58 = arith.constant dense<0.000000e+00> : vector<16xf32>
    %308 = vector.multi_reduction <add>, %307, %cst_58 [0] : vector<8x16xf32> to vector<16xf32>
    %309 = vector.shape_cast %308 : vector<16xf32> to vector<1x16xf32>
    %c16_i32_59 = arith.constant 16 : i32
    %310 = vector.broadcast %c16_i32_59 : i32 to vector<30x16xi32>
    %311 = arith.cmpi eq, %26, %310 : vector<30x16xi32>
    %312 = vector.shape_cast %306 : vector<1x16xf32> to vector<1x16xf32>
    %313 = vector.broadcast %312 : vector<1x16xf32> to vector<30x16xf32>
    %314 = arith.select %311, %313, %297 : vector<30x16xi1>, vector<30x16xf32>
    %315 = vector.shape_cast %309 : vector<1x16xf32> to vector<1x16xf32>
    %316 = vector.broadcast %315 : vector<1x16xf32> to vector<30x16xf32>
    %317 = arith.select %311, %316, %300 : vector<30x16xi1>, vector<30x16xf32>
    %c17_i32 = arith.constant 17 : i32
    %318 = vector.broadcast %c17_i32 : i32 to vector<8x16xi32>
    %319 = arith.cmpi eq, %19, %318 : vector<8x16xi32>
    %320 = arith.extui %319 : vector<8x16xi1> to vector<8x16xi32>
    %321 = arith.sitofp %320 : vector<8x16xi32> to vector<8x16xf32>
    %cst_60 = arith.constant dense<0.000000e+00> : vector<16xf32>
    %322 = vector.multi_reduction <add>, %321, %cst_60 [0] : vector<8x16xf32> to vector<16xf32>
    %323 = vector.shape_cast %322 : vector<16xf32> to vector<1x16xf32>
    %324 = arith.mulf %321, %25 : vector<8x16xf32>
    %cst_61 = arith.constant dense<0.000000e+00> : vector<16xf32>
    %325 = vector.multi_reduction <add>, %324, %cst_61 [0] : vector<8x16xf32> to vector<16xf32>
    %326 = vector.shape_cast %325 : vector<16xf32> to vector<1x16xf32>
    %c17_i32_62 = arith.constant 17 : i32
    %327 = vector.broadcast %c17_i32_62 : i32 to vector<30x16xi32>
    %328 = arith.cmpi eq, %26, %327 : vector<30x16xi32>
    %329 = vector.shape_cast %323 : vector<1x16xf32> to vector<1x16xf32>
    %330 = vector.broadcast %329 : vector<1x16xf32> to vector<30x16xf32>
    %331 = arith.select %328, %330, %314 : vector<30x16xi1>, vector<30x16xf32>
    %332 = vector.shape_cast %326 : vector<1x16xf32> to vector<1x16xf32>
    %333 = vector.broadcast %332 : vector<1x16xf32> to vector<30x16xf32>
    %334 = arith.select %328, %333, %317 : vector<30x16xi1>, vector<30x16xf32>
    %c18_i32 = arith.constant 18 : i32
    %335 = vector.broadcast %c18_i32 : i32 to vector<8x16xi32>
    %336 = arith.cmpi eq, %19, %335 : vector<8x16xi32>
    %337 = arith.extui %336 : vector<8x16xi1> to vector<8x16xi32>
    %338 = arith.sitofp %337 : vector<8x16xi32> to vector<8x16xf32>
    %cst_63 = arith.constant dense<0.000000e+00> : vector<16xf32>
    %339 = vector.multi_reduction <add>, %338, %cst_63 [0] : vector<8x16xf32> to vector<16xf32>
    %340 = vector.shape_cast %339 : vector<16xf32> to vector<1x16xf32>
    %341 = arith.mulf %338, %25 : vector<8x16xf32>
    %cst_64 = arith.constant dense<0.000000e+00> : vector<16xf32>
    %342 = vector.multi_reduction <add>, %341, %cst_64 [0] : vector<8x16xf32> to vector<16xf32>
    %343 = vector.shape_cast %342 : vector<16xf32> to vector<1x16xf32>
    %c18_i32_65 = arith.constant 18 : i32
    %344 = vector.broadcast %c18_i32_65 : i32 to vector<30x16xi32>
    %345 = arith.cmpi eq, %26, %344 : vector<30x16xi32>
    %346 = vector.shape_cast %340 : vector<1x16xf32> to vector<1x16xf32>
    %347 = vector.broadcast %346 : vector<1x16xf32> to vector<30x16xf32>
    %348 = arith.select %345, %347, %331 : vector<30x16xi1>, vector<30x16xf32>
    %349 = vector.shape_cast %343 : vector<1x16xf32> to vector<1x16xf32>
    %350 = vector.broadcast %349 : vector<1x16xf32> to vector<30x16xf32>
    %351 = arith.select %345, %350, %334 : vector<30x16xi1>, vector<30x16xf32>
    %c19_i32 = arith.constant 19 : i32
    %352 = vector.broadcast %c19_i32 : i32 to vector<8x16xi32>
    %353 = arith.cmpi eq, %19, %352 : vector<8x16xi32>
    %354 = arith.extui %353 : vector<8x16xi1> to vector<8x16xi32>
    %355 = arith.sitofp %354 : vector<8x16xi32> to vector<8x16xf32>
    %cst_66 = arith.constant dense<0.000000e+00> : vector<16xf32>
    %356 = vector.multi_reduction <add>, %355, %cst_66 [0] : vector<8x16xf32> to vector<16xf32>
    %357 = vector.shape_cast %356 : vector<16xf32> to vector<1x16xf32>
    %358 = arith.mulf %355, %25 : vector<8x16xf32>
    %cst_67 = arith.constant dense<0.000000e+00> : vector<16xf32>
    %359 = vector.multi_reduction <add>, %358, %cst_67 [0] : vector<8x16xf32> to vector<16xf32>
    %360 = vector.shape_cast %359 : vector<16xf32> to vector<1x16xf32>
    %c19_i32_68 = arith.constant 19 : i32
    %361 = vector.broadcast %c19_i32_68 : i32 to vector<30x16xi32>
    %362 = arith.cmpi eq, %26, %361 : vector<30x16xi32>
    %363 = vector.shape_cast %357 : vector<1x16xf32> to vector<1x16xf32>
    %364 = vector.broadcast %363 : vector<1x16xf32> to vector<30x16xf32>
    %365 = arith.select %362, %364, %348 : vector<30x16xi1>, vector<30x16xf32>
    %366 = vector.shape_cast %360 : vector<1x16xf32> to vector<1x16xf32>
    %367 = vector.broadcast %366 : vector<1x16xf32> to vector<30x16xf32>
    %368 = arith.select %362, %367, %351 : vector<30x16xi1>, vector<30x16xf32>
    %c20_i32 = arith.constant 20 : i32
    %369 = vector.broadcast %c20_i32 : i32 to vector<8x16xi32>
    %370 = arith.cmpi eq, %19, %369 : vector<8x16xi32>
    %371 = arith.extui %370 : vector<8x16xi1> to vector<8x16xi32>
    %372 = arith.sitofp %371 : vector<8x16xi32> to vector<8x16xf32>
    %cst_69 = arith.constant dense<0.000000e+00> : vector<16xf32>
    %373 = vector.multi_reduction <add>, %372, %cst_69 [0] : vector<8x16xf32> to vector<16xf32>
    %374 = vector.shape_cast %373 : vector<16xf32> to vector<1x16xf32>
    %375 = arith.mulf %372, %25 : vector<8x16xf32>
    %cst_70 = arith.constant dense<0.000000e+00> : vector<16xf32>
    %376 = vector.multi_reduction <add>, %375, %cst_70 [0] : vector<8x16xf32> to vector<16xf32>
    %377 = vector.shape_cast %376 : vector<16xf32> to vector<1x16xf32>
    %c20_i32_71 = arith.constant 20 : i32
    %378 = vector.broadcast %c20_i32_71 : i32 to vector<30x16xi32>
    %379 = arith.cmpi eq, %26, %378 : vector<30x16xi32>
    %380 = vector.shape_cast %374 : vector<1x16xf32> to vector<1x16xf32>
    %381 = vector.broadcast %380 : vector<1x16xf32> to vector<30x16xf32>
    %382 = arith.select %379, %381, %365 : vector<30x16xi1>, vector<30x16xf32>
    %383 = vector.shape_cast %377 : vector<1x16xf32> to vector<1x16xf32>
    %384 = vector.broadcast %383 : vector<1x16xf32> to vector<30x16xf32>
    %385 = arith.select %379, %384, %368 : vector<30x16xi1>, vector<30x16xf32>
    %c21_i32 = arith.constant 21 : i32
    %386 = vector.broadcast %c21_i32 : i32 to vector<8x16xi32>
    %387 = arith.cmpi eq, %19, %386 : vector<8x16xi32>
    %388 = arith.extui %387 : vector<8x16xi1> to vector<8x16xi32>
    %389 = arith.sitofp %388 : vector<8x16xi32> to vector<8x16xf32>
    %cst_72 = arith.constant dense<0.000000e+00> : vector<16xf32>
    %390 = vector.multi_reduction <add>, %389, %cst_72 [0] : vector<8x16xf32> to vector<16xf32>
    %391 = vector.shape_cast %390 : vector<16xf32> to vector<1x16xf32>
    %392 = arith.mulf %389, %25 : vector<8x16xf32>
    %cst_73 = arith.constant dense<0.000000e+00> : vector<16xf32>
    %393 = vector.multi_reduction <add>, %392, %cst_73 [0] : vector<8x16xf32> to vector<16xf32>
    %394 = vector.shape_cast %393 : vector<16xf32> to vector<1x16xf32>
    %c21_i32_74 = arith.constant 21 : i32
    %395 = vector.broadcast %c21_i32_74 : i32 to vector<30x16xi32>
    %396 = arith.cmpi eq, %26, %395 : vector<30x16xi32>
    %397 = vector.shape_cast %391 : vector<1x16xf32> to vector<1x16xf32>
    %398 = vector.broadcast %397 : vector<1x16xf32> to vector<30x16xf32>
    %399 = arith.select %396, %398, %382 : vector<30x16xi1>, vector<30x16xf32>
    %400 = vector.shape_cast %394 : vector<1x16xf32> to vector<1x16xf32>
    %401 = vector.broadcast %400 : vector<1x16xf32> to vector<30x16xf32>
    %402 = arith.select %396, %401, %385 : vector<30x16xi1>, vector<30x16xf32>
    %c22_i32 = arith.constant 22 : i32
    %403 = vector.broadcast %c22_i32 : i32 to vector<8x16xi32>
    %404 = arith.cmpi eq, %19, %403 : vector<8x16xi32>
    %405 = arith.extui %404 : vector<8x16xi1> to vector<8x16xi32>
    %406 = arith.sitofp %405 : vector<8x16xi32> to vector<8x16xf32>
    %cst_75 = arith.constant dense<0.000000e+00> : vector<16xf32>
    %407 = vector.multi_reduction <add>, %406, %cst_75 [0] : vector<8x16xf32> to vector<16xf32>
    %408 = vector.shape_cast %407 : vector<16xf32> to vector<1x16xf32>
    %409 = arith.mulf %406, %25 : vector<8x16xf32>
    %cst_76 = arith.constant dense<0.000000e+00> : vector<16xf32>
    %410 = vector.multi_reduction <add>, %409, %cst_76 [0] : vector<8x16xf32> to vector<16xf32>
    %411 = vector.shape_cast %410 : vector<16xf32> to vector<1x16xf32>
    %c22_i32_77 = arith.constant 22 : i32
    %412 = vector.broadcast %c22_i32_77 : i32 to vector<30x16xi32>
    %413 = arith.cmpi eq, %26, %412 : vector<30x16xi32>
    %414 = vector.shape_cast %408 : vector<1x16xf32> to vector<1x16xf32>
    %415 = vector.broadcast %414 : vector<1x16xf32> to vector<30x16xf32>
    %416 = arith.select %413, %415, %399 : vector<30x16xi1>, vector<30x16xf32>
    %417 = vector.shape_cast %411 : vector<1x16xf32> to vector<1x16xf32>
    %418 = vector.broadcast %417 : vector<1x16xf32> to vector<30x16xf32>
    %419 = arith.select %413, %418, %402 : vector<30x16xi1>, vector<30x16xf32>
    %c23_i32 = arith.constant 23 : i32
    %420 = vector.broadcast %c23_i32 : i32 to vector<8x16xi32>
    %421 = arith.cmpi eq, %19, %420 : vector<8x16xi32>
    %422 = arith.extui %421 : vector<8x16xi1> to vector<8x16xi32>
    %423 = arith.sitofp %422 : vector<8x16xi32> to vector<8x16xf32>
    %cst_78 = arith.constant dense<0.000000e+00> : vector<16xf32>
    %424 = vector.multi_reduction <add>, %423, %cst_78 [0] : vector<8x16xf32> to vector<16xf32>
    %425 = vector.shape_cast %424 : vector<16xf32> to vector<1x16xf32>
    %426 = arith.mulf %423, %25 : vector<8x16xf32>
    %cst_79 = arith.constant dense<0.000000e+00> : vector<16xf32>
    %427 = vector.multi_reduction <add>, %426, %cst_79 [0] : vector<8x16xf32> to vector<16xf32>
    %428 = vector.shape_cast %427 : vector<16xf32> to vector<1x16xf32>
    %c23_i32_80 = arith.constant 23 : i32
    %429 = vector.broadcast %c23_i32_80 : i32 to vector<30x16xi32>
    %430 = arith.cmpi eq, %26, %429 : vector<30x16xi32>
    %431 = vector.shape_cast %425 : vector<1x16xf32> to vector<1x16xf32>
    %432 = vector.broadcast %431 : vector<1x16xf32> to vector<30x16xf32>
    %433 = arith.select %430, %432, %416 : vector<30x16xi1>, vector<30x16xf32>
    %434 = vector.shape_cast %428 : vector<1x16xf32> to vector<1x16xf32>
    %435 = vector.broadcast %434 : vector<1x16xf32> to vector<30x16xf32>
    %436 = arith.select %430, %435, %419 : vector<30x16xi1>, vector<30x16xf32>
    %c24_i32 = arith.constant 24 : i32
    %437 = vector.broadcast %c24_i32 : i32 to vector<8x16xi32>
    %438 = arith.cmpi eq, %19, %437 : vector<8x16xi32>
    %439 = arith.extui %438 : vector<8x16xi1> to vector<8x16xi32>
    %440 = arith.sitofp %439 : vector<8x16xi32> to vector<8x16xf32>
    %cst_81 = arith.constant dense<0.000000e+00> : vector<16xf32>
    %441 = vector.multi_reduction <add>, %440, %cst_81 [0] : vector<8x16xf32> to vector<16xf32>
    %442 = vector.shape_cast %441 : vector<16xf32> to vector<1x16xf32>
    %443 = arith.mulf %440, %25 : vector<8x16xf32>
    %cst_82 = arith.constant dense<0.000000e+00> : vector<16xf32>
    %444 = vector.multi_reduction <add>, %443, %cst_82 [0] : vector<8x16xf32> to vector<16xf32>
    %445 = vector.shape_cast %444 : vector<16xf32> to vector<1x16xf32>
    %c24_i32_83 = arith.constant 24 : i32
    %446 = vector.broadcast %c24_i32_83 : i32 to vector<30x16xi32>
    %447 = arith.cmpi eq, %26, %446 : vector<30x16xi32>
    %448 = vector.shape_cast %442 : vector<1x16xf32> to vector<1x16xf32>
    %449 = vector.broadcast %448 : vector<1x16xf32> to vector<30x16xf32>
    %450 = arith.select %447, %449, %433 : vector<30x16xi1>, vector<30x16xf32>
    %451 = vector.shape_cast %445 : vector<1x16xf32> to vector<1x16xf32>
    %452 = vector.broadcast %451 : vector<1x16xf32> to vector<30x16xf32>
    %453 = arith.select %447, %452, %436 : vector<30x16xi1>, vector<30x16xf32>
    %c25_i32 = arith.constant 25 : i32
    %454 = vector.broadcast %c25_i32 : i32 to vector<8x16xi32>
    %455 = arith.cmpi eq, %19, %454 : vector<8x16xi32>
    %456 = arith.extui %455 : vector<8x16xi1> to vector<8x16xi32>
    %457 = arith.sitofp %456 : vector<8x16xi32> to vector<8x16xf32>
    %cst_84 = arith.constant dense<0.000000e+00> : vector<16xf32>
    %458 = vector.multi_reduction <add>, %457, %cst_84 [0] : vector<8x16xf32> to vector<16xf32>
    %459 = vector.shape_cast %458 : vector<16xf32> to vector<1x16xf32>
    %460 = arith.mulf %457, %25 : vector<8x16xf32>
    %cst_85 = arith.constant dense<0.000000e+00> : vector<16xf32>
    %461 = vector.multi_reduction <add>, %460, %cst_85 [0] : vector<8x16xf32> to vector<16xf32>
    %462 = vector.shape_cast %461 : vector<16xf32> to vector<1x16xf32>
    %c25_i32_86 = arith.constant 25 : i32
    %463 = vector.broadcast %c25_i32_86 : i32 to vector<30x16xi32>
    %464 = arith.cmpi eq, %26, %463 : vector<30x16xi32>
    %465 = vector.shape_cast %459 : vector<1x16xf32> to vector<1x16xf32>
    %466 = vector.broadcast %465 : vector<1x16xf32> to vector<30x16xf32>
    %467 = arith.select %464, %466, %450 : vector<30x16xi1>, vector<30x16xf32>
    %468 = vector.shape_cast %462 : vector<1x16xf32> to vector<1x16xf32>
    %469 = vector.broadcast %468 : vector<1x16xf32> to vector<30x16xf32>
    %470 = arith.select %464, %469, %453 : vector<30x16xi1>, vector<30x16xf32>
    %c26_i32 = arith.constant 26 : i32
    %471 = vector.broadcast %c26_i32 : i32 to vector<8x16xi32>
    %472 = arith.cmpi eq, %19, %471 : vector<8x16xi32>
    %473 = arith.extui %472 : vector<8x16xi1> to vector<8x16xi32>
    %474 = arith.sitofp %473 : vector<8x16xi32> to vector<8x16xf32>
    %cst_87 = arith.constant dense<0.000000e+00> : vector<16xf32>
    %475 = vector.multi_reduction <add>, %474, %cst_87 [0] : vector<8x16xf32> to vector<16xf32>
    %476 = vector.shape_cast %475 : vector<16xf32> to vector<1x16xf32>
    %477 = arith.mulf %474, %25 : vector<8x16xf32>
    %cst_88 = arith.constant dense<0.000000e+00> : vector<16xf32>
    %478 = vector.multi_reduction <add>, %477, %cst_88 [0] : vector<8x16xf32> to vector<16xf32>
    %479 = vector.shape_cast %478 : vector<16xf32> to vector<1x16xf32>
    %c26_i32_89 = arith.constant 26 : i32
    %480 = vector.broadcast %c26_i32_89 : i32 to vector<30x16xi32>
    %481 = arith.cmpi eq, %26, %480 : vector<30x16xi32>
    %482 = vector.shape_cast %476 : vector<1x16xf32> to vector<1x16xf32>
    %483 = vector.broadcast %482 : vector<1x16xf32> to vector<30x16xf32>
    %484 = arith.select %481, %483, %467 : vector<30x16xi1>, vector<30x16xf32>
    %485 = vector.shape_cast %479 : vector<1x16xf32> to vector<1x16xf32>
    %486 = vector.broadcast %485 : vector<1x16xf32> to vector<30x16xf32>
    %487 = arith.select %481, %486, %470 : vector<30x16xi1>, vector<30x16xf32>
    %c27_i32 = arith.constant 27 : i32
    %488 = vector.broadcast %c27_i32 : i32 to vector<8x16xi32>
    %489 = arith.cmpi eq, %19, %488 : vector<8x16xi32>
    %490 = arith.extui %489 : vector<8x16xi1> to vector<8x16xi32>
    %491 = arith.sitofp %490 : vector<8x16xi32> to vector<8x16xf32>
    %cst_90 = arith.constant dense<0.000000e+00> : vector<16xf32>
    %492 = vector.multi_reduction <add>, %491, %cst_90 [0] : vector<8x16xf32> to vector<16xf32>
    %493 = vector.shape_cast %492 : vector<16xf32> to vector<1x16xf32>
    %494 = arith.mulf %491, %25 : vector<8x16xf32>
    %cst_91 = arith.constant dense<0.000000e+00> : vector<16xf32>
    %495 = vector.multi_reduction <add>, %494, %cst_91 [0] : vector<8x16xf32> to vector<16xf32>
    %496 = vector.shape_cast %495 : vector<16xf32> to vector<1x16xf32>
    %c27_i32_92 = arith.constant 27 : i32
    %497 = vector.broadcast %c27_i32_92 : i32 to vector<30x16xi32>
    %498 = arith.cmpi eq, %26, %497 : vector<30x16xi32>
    %499 = vector.shape_cast %493 : vector<1x16xf32> to vector<1x16xf32>
    %500 = vector.broadcast %499 : vector<1x16xf32> to vector<30x16xf32>
    %501 = arith.select %498, %500, %484 : vector<30x16xi1>, vector<30x16xf32>
    %502 = vector.shape_cast %496 : vector<1x16xf32> to vector<1x16xf32>
    %503 = vector.broadcast %502 : vector<1x16xf32> to vector<30x16xf32>
    %504 = arith.select %498, %503, %487 : vector<30x16xi1>, vector<30x16xf32>
    %c28_i32 = arith.constant 28 : i32
    %505 = vector.broadcast %c28_i32 : i32 to vector<8x16xi32>
    %506 = arith.cmpi eq, %19, %505 : vector<8x16xi32>
    %507 = arith.extui %506 : vector<8x16xi1> to vector<8x16xi32>
    %508 = arith.sitofp %507 : vector<8x16xi32> to vector<8x16xf32>
    %cst_93 = arith.constant dense<0.000000e+00> : vector<16xf32>
    %509 = vector.multi_reduction <add>, %508, %cst_93 [0] : vector<8x16xf32> to vector<16xf32>
    %510 = vector.shape_cast %509 : vector<16xf32> to vector<1x16xf32>
    %511 = arith.mulf %508, %25 : vector<8x16xf32>
    %cst_94 = arith.constant dense<0.000000e+00> : vector<16xf32>
    %512 = vector.multi_reduction <add>, %511, %cst_94 [0] : vector<8x16xf32> to vector<16xf32>
    %513 = vector.shape_cast %512 : vector<16xf32> to vector<1x16xf32>
    %c28_i32_95 = arith.constant 28 : i32
    %514 = vector.broadcast %c28_i32_95 : i32 to vector<30x16xi32>
    %515 = arith.cmpi eq, %26, %514 : vector<30x16xi32>
    %516 = vector.shape_cast %510 : vector<1x16xf32> to vector<1x16xf32>
    %517 = vector.broadcast %516 : vector<1x16xf32> to vector<30x16xf32>
    %518 = arith.select %515, %517, %501 : vector<30x16xi1>, vector<30x16xf32>
    %519 = vector.shape_cast %513 : vector<1x16xf32> to vector<1x16xf32>
    %520 = vector.broadcast %519 : vector<1x16xf32> to vector<30x16xf32>
    %521 = arith.select %515, %520, %504 : vector<30x16xi1>, vector<30x16xf32>
    %c29_i32_96 = arith.constant 29 : i32
    %522 = vector.broadcast %c29_i32_96 : i32 to vector<8x16xi32>
    %523 = arith.cmpi eq, %19, %522 : vector<8x16xi32>
    %524 = arith.extui %523 : vector<8x16xi1> to vector<8x16xi32>
    %525 = arith.sitofp %524 : vector<8x16xi32> to vector<8x16xf32>
    %cst_97 = arith.constant dense<0.000000e+00> : vector<16xf32>
    %526 = vector.multi_reduction <add>, %525, %cst_97 [0] : vector<8x16xf32> to vector<16xf32>
    %527 = vector.shape_cast %526 : vector<16xf32> to vector<1x16xf32>
    %528 = arith.mulf %525, %25 : vector<8x16xf32>
    %cst_98 = arith.constant dense<0.000000e+00> : vector<16xf32>
    %529 = vector.multi_reduction <add>, %528, %cst_98 [0] : vector<8x16xf32> to vector<16xf32>
    %530 = vector.shape_cast %529 : vector<16xf32> to vector<1x16xf32>
    %c29_i32_99 = arith.constant 29 : i32
    %531 = vector.broadcast %c29_i32_99 : i32 to vector<30x16xi32>
    %532 = arith.cmpi eq, %26, %531 : vector<30x16xi32>
    %533 = vector.shape_cast %527 : vector<1x16xf32> to vector<1x16xf32>
    %534 = vector.broadcast %533 : vector<1x16xf32> to vector<30x16xf32>
    %535 = arith.select %532, %534, %518 : vector<30x16xi1>, vector<30x16xf32>
    %536 = vector.shape_cast %530 : vector<1x16xf32> to vector<1x16xf32>
    %537 = vector.broadcast %536 : vector<1x16xf32> to vector<30x16xf32>
    %538 = arith.select %532, %537, %521 : vector<30x16xi1>, vector<30x16xf32>
    %c0_i32_100 = arith.constant 0 : i32
    %539 = arith.cmpi eq, %arg0, %c0_i32_100 : i32
    %540 = arith.extui %539 : i1 to i32
    %c0_i32_101 = arith.constant 0 : i32
    %541 = arith.cmpi ne, %540, %c0_i32_101 : i32
    scf.if %541 {
      %cst_112 = arith.constant 0.000000e+00 : f32
      %551 = vector.broadcast %cst_112 : f32 to vector<30x16xf32>
      %c0_113 = arith.constant 0 : index
      %c0_114 = arith.constant 0 : index
      %552 = vector.load %arg7[%c0_113, %c0_114] : memref<30x16xf32, #tpu.memory_space<vmem>>, vector<30x16xf32>
      tpu.vector_store %arg7[%c0_113, %c0_114], %551 {strides = array<i32>} : memref<30x16xf32, #tpu.memory_space<vmem>>, vector<30x16xf32>,
      %cst_115 = arith.constant 0.000000e+00 : f32
      %553 = vector.broadcast %cst_115 : f32 to vector<30x16xf32>
      %c0_116 = arith.constant 0 : index
      %c0_117 = arith.constant 0 : index
      %554 = vector.load %arg8[%c0_116, %c0_117] : memref<30x16xf32, #tpu.memory_space<vmem>>, vector<30x16xf32>
      tpu.vector_store %arg8[%c0_116, %c0_117], %553 {strides = array<i32>} : memref<30x16xf32, #tpu.memory_space<vmem>>, vector<30x16xf32>,
    } else {
    }
    %c0_102 = arith.constant 0 : index
    %c0_103 = arith.constant 0 : index
    %542 = vector.load %arg7[%c0_102, %c0_103] : memref<30x16xf32, #tpu.memory_space<vmem>>, vector<30x16xf32>
    %543 = arith.addf %542, %535 : vector<30x16xf32>
    %c0_104 = arith.constant 0 : index
    %c0_105 = arith.constant 0 : index
    %544 = vector.load %arg7[%c0_104, %c0_105] : memref<30x16xf32, #tpu.memory_space<vmem>>, vector<30x16xf32>
    tpu.vector_store %arg7[%c0_104, %c0_105], %543 {strides = array<i32>} : memref<30x16xf32, #tpu.memory_space<vmem>>, vector<30x16xf32>,
    %c0_106 = arith.constant 0 : index
    %c0_107 = arith.constant 0 : index
    %545 = vector.load %arg8[%c0_106, %c0_107] : memref<30x16xf32, #tpu.memory_space<vmem>>, vector<30x16xf32>
    %546 = arith.addf %545, %538 : vector<30x16xf32>
    %c0_108 = arith.constant 0 : index
    %c0_109 = arith.constant 0 : index
    %547 = vector.load %arg8[%c0_108, %c0_109] : memref<30x16xf32, #tpu.memory_space<vmem>>, vector<30x16xf32>
    tpu.vector_store %arg8[%c0_108, %c0_109], %546 {strides = array<i32>} : memref<30x16xf32, #tpu.memory_space<vmem>>, vector<30x16xf32>,
    %c1_i32_110 = arith.constant 1 : i32
    %548 = arith.cmpi eq, %arg0, %c1_i32_110 : i32
    %549 = arith.extui %548 : i1 to i32
    %c0_i32_111 = arith.constant 0 : i32
    %550 = arith.cmpi ne, %549, %c0_i32_111 : i32
    scf.if %550 {
      %c0_112 = arith.constant 0 : index
      %c0_113 = arith.constant 0 : index
      %551 = vector.load %arg3[%c0_112, %c0_113] : memref<16x4xf32, #tpu.memory_space<vmem>>, vector<16x4xf32>
      %c0_114 = arith.constant 0 : index
      %c0_115 = arith.constant 0 : index
      %552 = vector.load %arg7[%c0_114, %c0_115] : memref<30x16xf32, #tpu.memory_space<vmem>>, vector<30x16xf32>
      %cst_116 = arith.constant dense<0.000000e+00> : vector<30x4xf32>
      %553 = tpu.matmul %552, %551, %cst_116 {dimension_numbers = #tpu.dot_dimension_numbers<[1], [0], [0], [1], [0, 0, 1, 1], [], []>} : vector<30x16xf32>, vector<16x4xf32>, vector<30x4xf32> -> vector<30x4xf32>
      %c0_117 = arith.constant 0 : index
      %c0_118 = arith.constant 0 : index
      %554 = vector.load %arg8[%c0_117, %c0_118] : memref<30x16xf32, #tpu.memory_space<vmem>>, vector<30x16xf32>
      %cst_119 = arith.constant dense<0.000000e+00> : vector<30x4xf32>
      %555 = tpu.matmul %554, %551, %cst_119 {dimension_numbers = #tpu.dot_dimension_numbers<[1], [0], [0], [1], [0, 0, 1, 1], [], []>} : vector<30x16xf32>, vector<16x4xf32>, vector<30x4xf32> -> vector<30x4xf32>
      %cst_120 = arith.constant 0.000000e+00 : f32
      %556 = vector.broadcast %cst_120 : f32 to vector<30x4xf32>
      %557 = arith.cmpf ogt, %553, %556 : vector<30x4xf32>
      %c0_121 = arith.constant 0 : index
      %c0_122 = arith.constant 0 : index
      %558 = vector.load %arg4[%c0_121, %c0_122] : memref<30x4xf32, #tpu.memory_space<vmem>>, vector<30x4xf32>
      %cst_123 = arith.constant 6.000000e-01 : f32
      %559 = vector.broadcast %cst_123 : f32 to vector<30x4xf32>
      %560 = arith.mulf %559, %558 : vector<30x4xf32>
      %cst_124 = arith.constant 4.000000e-01 : f32
      %561 = vector.broadcast %cst_124 : f32 to vector<30x4xf32>
      %562 = arith.mulf %561, %553 : vector<30x4xf32>
      %563 = arith.addf %560, %562 : vector<30x4xf32>
      %c0_125 = arith.constant 0 : index
      %c0_126 = arith.constant 0 : index
      %564 = vector.load %arg4[%c0_125, %c0_126] : memref<30x4xf32, #tpu.memory_space<vmem>>, vector<30x4xf32>
      %565 = arith.select %557, %563, %564 : vector<30x4xi1>, vector<30x4xf32>
      %c0_127 = arith.constant 0 : index
      %c0_128 = arith.constant 0 : index
      %566 = vector.load %arg6[%c0_127, %c0_128] : memref<30x4xf32, #tpu.memory_space<vmem>>, vector<30x4xf32>
      tpu.vector_store %arg6[%c0_127, %c0_128], %565 {strides = array<i32>} : memref<30x4xf32, #tpu.memory_space<vmem>>, vector<30x4xf32>,
      %cst_129 = arith.constant 1.000000e+00 : f32
      %567 = vector.broadcast %cst_129 : f32 to vector<30x4xf32>
      %568 = arith.select %557, %565, %567 : vector<30x4xi1>, vector<30x4xf32>
      %cst_130 = arith.constant 6.400000e+01 : f32
      %569 = vector.broadcast %cst_130 : f32 to vector<30x4xf32>
      %570 = arith.divf %569, %568 : vector<30x4xf32>
      %cst_131 = arith.constant 0.000000e+00 : f32
      %571 = vector.broadcast %cst_131 : f32 to vector<30x4xf32>
      %572 = arith.select %557, %570, %571 : vector<30x4xi1>, vector<30x4xf32>
      %573 = arith.extui %557 : vector<30x4xi1> to vector<30x4xi32>
      %574 = arith.sitofp %573 : vector<30x4xi32> to vector<30x4xf32>
      %cst_132 = arith.constant dense<0.000000e+00> : vector<4xf32>
      %575 = vector.multi_reduction <add>, %574, %cst_132 [0] : vector<30x4xf32> to vector<4xf32>
      %576 = vector.shape_cast %575 : vector<4xf32> to vector<1x4xf32>
      %cst_133 = arith.constant 0.000000e+00 : f32
      %577 = vector.broadcast %cst_133 : f32 to vector<1x4xf32>
      %578 = arith.cmpf ogt, %576, %577 : vector<1x4xf32>
      %cst_134 = arith.constant 1.000000e+00 : f32
      %579 = vector.broadcast %cst_134 : f32 to vector<1x4xf32>
      %580 = arith.divf %579, %576 : vector<1x4xf32>
      %cst_135 = arith.constant 1.000000e+00 : f32
      %581 = vector.broadcast %cst_135 : f32 to vector<1x4xf32>
      %582 = arith.select %578, %580, %581 : vector<1x4xi1>, vector<1x4xf32>
      %583 = arith.mulf %555, %572 : vector<30x4xf32>
      %584 = vector.broadcast %582 : vector<1x4xf32> to vector<30x4xf32>
      %585 = arith.mulf %583, %584 : vector<30x4xf32>
      %cst_136 = arith.constant dense<0.000000e+00> : vector<4xf32>
      %586 = vector.multi_reduction <add>, %585, %cst_136 [0] : vector<30x4xf32> to vector<4xf32>
      %587 = vector.shape_cast %586 : vector<4xf32> to vector<1x4xf32>
      %cst_137 = arith.constant dense<0.000000e+00> : vector<1xf32>
      %588 = vector.multi_reduction <add>, %587, %cst_137 [1] : vector<1x4xf32> to vector<1xf32>
      %589 = vector.shape_cast %588 : vector<1xf32> to vector<1x1xf32>
      %cst_138 = arith.constant 3.906250e-03 : f32
      %590 = vector.broadcast %cst_138 : f32 to vector<1x1xf32>
      %591 = arith.mulf %589, %590 : vector<1x1xf32>
      %c0_139 = arith.constant 0 : index
      %c0_140 = arith.constant 0 : index
      %592 = vector.load %arg5[%c0_139, %c0_140] : memref<1x1xf32, #tpu.memory_space<vmem>>, vector<1x1xf32>
      tpu.vector_store %arg5[%c0_139, %c0_140], %591 {strides = array<i32>} : memref<1x1xf32, #tpu.memory_space<vmem>>, vector<1x1xf32>,
    } else {
    }
    return
  }
  func.func @transform_0(%arg0: i32) -> (i32, i32) {
    %c0_i32 = arith.constant 0 : i32
    %c0_i32_0 = arith.constant 0 : i32
    return %arg0, %c0_i32 : i32, i32
  }
  func.func @transform_1(%arg0: i32) -> (i32, i32) {
    %c0_i32 = arith.constant 0 : i32
    %c0_i32_0 = arith.constant 0 : i32
    return %arg0, %c0_i32 : i32, i32
  }
  func.func @transform_2(%arg0: i32) -> (i32, i32) {
    %c0_i32 = arith.constant 0 : i32
    %c0_i32_0 = arith.constant 0 : i32
    %c0_i32_1 = arith.constant 0 : i32
    return %c0_i32, %c0_i32_0 : i32, i32
  }
  func.func @transform_3(%arg0: i32) -> (i32, i32) {
    %c0_i32 = arith.constant 0 : i32
    %c0_i32_0 = arith.constant 0 : i32
    %c0_i32_1 = arith.constant 0 : i32
    return %c0_i32, %c0_i32_0 : i32, i32
  }
  func.func @transform_4(%arg0: i32) -> (i32, i32) {
    %c0_i32 = arith.constant 0 : i32
    %c0_i32_0 = arith.constant 0 : i32
    %c0_i32_1 = arith.constant 0 : i32
    return %c0_i32, %c0_i32_0 : i32, i32
  }
  func.func @transform_5(%arg0: i32) -> (i32, i32) {
    %c0_i32 = arith.constant 0 : i32
    %c0_i32_0 = arith.constant 0 : i32
    %c0_i32_1 = arith.constant 0 : i32
    return %c0_i32, %c0_i32_0 : i32, i32
  }
}

</mosaic_0001>

<llo_original>
// kernel: tpu_custom_call.1
$region0: #{tpu_custom_call.1}
  #allocation0 [shape = 'u32[]', space=smem, size = 0x4, offset = 0x4, fixed_abs, tag = 'smem constant byte address 0x4 - core index']
  #allocation1 [shape = 'u32[72,128]{1,0:T(1,128)}', space=vmem, size = 0x9000, scoped, tag = 'internal scratch']
  #allocation2 [shape = 'f32[30,16]{1,0:T(8,128)}', space=vmem, size = 0x4000, scoped, tag = 'scratch operand']
  #allocation3 [shape = 'f32[30,16]{1,0:T(8,128)}', space=vmem, size = 0x4000, scoped, tag = 'scratch operand']
  %s0 = inlined_call_operand.vmem [shape: f32[16,16], index: 0, kind: input, shape index: {}]
  %s1 = inlined_call_operand.vmem [shape: f32[16,16], index: 1, kind: input, shape index: {}]
  %s2 = inlined_call_operand.vmem [shape: f32[16,4], index: 2, kind: input, shape index: {}]
  %s3 = inlined_call_operand.vmem [shape: f32[30,4], index: 3, kind: input, shape index: {}]
  %s4 = inlined_call_operand.hbm [shape: f32[1,1], index: 4, kind: output, shape index: {0}]
  %s5 = inlined_call_operand.vmem [shape: f32[30,4], index: 5, kind: output, shape index: {1}]
  %6 = xla_tuple %s4, %s5
  %s7 = sld [smem:[#allocation0]]
  $region65: #{tpu_custom_call.1} parent=0
    _
  %s9 = ssub.s32 1, %s7
  %s10 = scalar_select 0, %s9, %s7
  $region1: #{tpu_custom_call.1} parent=0
    #allocation4 [shape = 'u8[512]{0}', space=vmem, size = 0x400, scoped, tag = 'output window, operand 0, single buffered']
    #allocation5 [shape = 's32[2]{0}', space=sflag, size = 0x8, scoped, tag = 'scoped memory for tpu_custom_call.1']
    %11 = vsyncpa [#allocation5], 0
    loop: start=0, step=1, limit=4
    $region2: #{tpu_custom_call.1} parent=1 // loop_pre_header
      _
    $region3: #{tpu_custom_call.1} parent=1 // loop_header
      %s13 = sphi 0, %s17
      %p14 = scmp.ge.s32.totalorder %s13, 4
      %s23 = sphi 0, %s25
      %s26 = sphi 0, %s23
      %s27 = sphi 0, %s26
      %s43 = sphi 0, %s27
      %s49 = sphi 0, %s51
      %s52 = sphi 0, %s49
      %s53 = sphi 0, %s52
      %s69 = sphi 0, %s53
      %s73 = sphi 0, %s73
      %s75 = sphi 0, %s73
      %s76 = sphi 0, %s75
      %s90 = sphi 0, %s76
      %s94 = sphi 0, %s94
      %s96 = sphi 0, %s94
      %s97 = sphi 0, %s96
      %s111 = sphi 0, %s97
      %s115 = sphi 0, %s115
      %s117 = sphi 0, %s115
      %s118 = sphi 0, %s117
      %s132 = sphi 0, %s118
      %s136 = sphi 0, %s136
      %s138 = sphi 0, %s136
      %s139 = sphi 0, %s138
      %s153 = sphi 0, %s139
    $region4: #{tpu_custom_call.1} parent=1 // loop_header_branch
      %16 = sbr.rel (%p14) target = $region8
    $region5: #{tpu_custom_call.1} parent=1 // loop_body
      %s18 = ssub.s32 %s13, 1
      %s19 = ssub.s32 %s13, 2
      %s20 = sadd.s32 %s13, 1
      %s21 = ssub.s32 %s13, %s20
      %p22 = scmp.eq.s32.totalorder %s21, 0
      %s24 = sadd.s32 %s23, 1
      %s25 = scalar_select %p22, %s23, %s24
      %p28 = pneg %p22
      %p29 = scmp.eq.s32.totalorder %s13, 1
      %p30 = por %p28, %p29
      %p31 = scmp.ne.s32.totalorder %s23, %s26
      %p32 = scmp.eq.s32.totalorder %s13, 0
      %p33 = por %p31, %p32
      %p34 = scmp.ne.s32.totalorder %s23, %s26
      %p35 = scmp.eq.s32.totalorder %s18, 1
      %p36 = por %p34, %p35
      %p37 = scmp.ne.s32.totalorder %s26, %s27
      %p38 = scmp.eq.s32.totalorder %s18, 0
      %p39 = por %p37, %p38
      %p40 = scmp.ne.s32.totalorder %s26, %s27
      %p41 = scmp.eq.s32.totalorder %s19, 1
      %p42 = por %p40, %p41
      %p44 = scmp.ne.s32.totalorder %s27, %s43
      %p45 = scmp.eq.s32.totalorder %s19, 0
      %p46 = por %p44, %p45
      %s47 = ssub.s32 %s13, %s20
      %p48 = scmp.eq.s32.totalorder %s47, 0
      %s50 = sadd.s32 %s49, 1
      %s51 = scalar_select %p48, %s49, %s50
      %p54 = pneg %p48
      %p55 = scmp.eq.s32.totalorder %s13, 1
      %p56 = por %p54, %p55
      %p57 = scmp.ne.s32.totalorder %s49, %s52
      %p58 = scmp.eq.s32.totalorder %s13, 0
      %p59 = por %p57, %p58
      %p60 = scmp.ne.s32.totalorder %s49, %s52
      %p61 = scmp.eq.s32.totalorder %s18, 1
      %p62 = por %p60, %p61
      %p63 = scmp.ne.s32.totalorder %s52, %s53
      %p64 = scmp.eq.s32.totalorder %s18, 0
      %p65 = por %p63, %p64
      %p66 = scmp.ne.s32.totalorder %s52, %s53
      %p67 = scmp.eq.s32.totalorder %s19, 1
      %p68 = por %p66, %p67
      %p70 = scmp.ne.s32.totalorder %s53, %s69
      %p71 = scmp.eq.s32.totalorder %s19, 0
      %p72 = por %p70, %p71
      %s74 = sadd.s32 %s73, 1
      %p77 = scmp.eq.s32.totalorder %s13, 1
      %p78 = scmp.ne.s32.totalorder %s73, %s75
      %p79 = scmp.eq.s32.totalorder %s13, 0
      %p80 = por %p78, %p79
      %p81 = scmp.ne.s32.totalorder %s73, %s75
      %p82 = scmp.eq.s32.totalorder %s18, 1
      %p83 = por %p81, %p82
      %p84 = scmp.ne.s32.totalorder %s75, %s76
      %p85 = scmp.eq.s32.totalorder %s18, 0
      %p86 = por %p84, %p85
      %p87 = scmp.ne.s32.totalorder %s75, %s76
      %p88 = scmp.eq.s32.totalorder %s19, 1
      %p89 = por %p87, %p88
      %p91 = scmp.ne.s32.totalorder %s76, %s90
      %p92 = scmp.eq.s32.totalorder %s19, 0
      %p93 = por %p91, %p92
      %s95 = sadd.s32 %s94, 1
      %p98 = scmp.eq.s32.totalorder %s13, 1
      %p99 = scmp.ne.s32.totalorder %s94, %s96
      %p100 = scmp.eq.s32.totalorder %s13, 0
      %p101 = por %p99, %p100
      %p102 = scmp.ne.s32.totalorder %s94, %s96
      %p103 = scmp.eq.s32.totalorder %s18, 1
      %p104 = por %p102, %p103
      %p105 = scmp.ne.s32.totalorder %s96, %s97
      %p106 = scmp.eq.s32.totalorder %s18, 0
      %p107 = por %p105, %p106
      %p108 = scmp.ne.s32.totalorder %s96, %s97
      %p109 = scmp.eq.s32.totalorder %s19, 1
      %p110 = por %p108, %p109
      %p112 = scmp.ne.s32.totalorder %s97, %s111
      %p113 = scmp.eq.s32.totalorder %s19, 0
      %p114 = por %p112, %p113
      %s116 = sadd.s32 %s115, 1
      %p119 = scmp.eq.s32.totalorder %s13, 1
      %p120 = scmp.ne.s32.totalorder %s115, %s117
      %p121 = scmp.eq.s32.totalorder %s13, 0
      %p122 = por %p120, %p121
      %p123 = scmp.ne.s32.totalorder %s115, %s117
      %p124 = scmp.eq.s32.totalorder %s18, 1
      %p125 = por %p123, %p124
      %p126 = scmp.ne.s32.totalorder %s117, %s118
      %p127 = scmp.eq.s32.totalorder %s18, 0
      %p128 = por %p126, %p127
      %p129 = scmp.ne.s32.totalorder %s117, %s118
      %p130 = scmp.eq.s32.totalorder %s19, 1
      %p131 = por %p129, %p130
      %p133 = scmp.ne.s32.totalorder %s118, %s132
      %p134 = scmp.eq.s32.totalorder %s19, 0
      %p135 = por %p133, %p134
      %s137 = sadd.s32 %s136, 1
      %p140 = scmp.eq.s32.totalorder %s13, 1
      %p141 = scmp.ne.s32.totalorder %s136, %s138
      %p142 = scmp.eq.s32.totalorder %s13, 0
      %p143 = por %p141, %p142
      %p144 = scmp.ne.s32.totalorder %s136, %s138
      %p145 = scmp.eq.s32.totalorder %s18, 1
      %p146 = por %p144, %p145
      %p147 = scmp.ne.s32.totalorder %s138, %s139
      %p148 = scmp.eq.s32.totalorder %s18, 0
      %p149 = por %p147, %p148
      %p150 = scmp.ne.s32.totalorder %s138, %s139
      %p151 = scmp.eq.s32.totalorder %s19, 1
      %p152 = por %p150, %p151
      %p154 = scmp.ne.s32.totalorder %s139, %s153
      %p155 = scmp.eq.s32.totalorder %s19, 0
      %p156 = por %p154, %p155
      %p157 = scmp.le.s32.totalorder 1, %s13
      %p158 = scmp.lt.s32.totalorder %s13, 3
      %p159 = pnand %p157, %p158
      %p160 = pneg %p159
      // Predicated region
      $region9: #{tpu_custom_call.1} parent=5 // pred_check
        _
      $region10: #{tpu_custom_call.1} parent=5 // pred_check_branch
        %162 = sbr.rel (%p159) target = $region12
      $region11: #{tpu_custom_call.1} parent=5 // pred_region
        %s163 = ssub.s32 %s13, 1
        // Predicated region
        $region13: #{tpu_custom_call.1} parent=11 // pred_check
          %p164 = pneg %p86
        $region14: #{tpu_custom_call.1} parent=11 // pred_check_branch
          %166 = sbr.rel (%p164) target = $region16
        $region15: #{tpu_custom_call.1} parent=11 // pred_region
          _
        $region16: #{tpu_custom_call.1} parent=11 // pred_fallthru
          _
        // Predicated region
        $region17: #{tpu_custom_call.1} parent=11 // pred_check
          %p167 = pneg %p107
        $region18: #{tpu_custom_call.1} parent=11 // pred_check_branch
          %169 = sbr.rel (%p167) target = $region20
        $region19: #{tpu_custom_call.1} parent=11 // pred_region
          _
        $region20: #{tpu_custom_call.1} parent=11 // pred_fallthru
          _
      $region12: #{tpu_custom_call.1} parent=5 // pred_fallthru
        _
      %p170 = scmp.lt.s32.totalorder %s13, 2
      // Predicated region
      $region21: #{tpu_custom_call.1} parent=5 // pred_check
        %p171 = pneg %p170
      $region22: #{tpu_custom_call.1} parent=5 // pred_check_branch
        %173 = sbr.rel (%p171) target = $region24
      $region23: #{tpu_custom_call.1} parent=5 // pred_region
        // Predicated region
        $region25: #{tpu_custom_call.1} parent=23 // pred_check
          %p174 = pneg %p33
        $region26: #{tpu_custom_call.1} parent=23 // pred_check_branch
          %176 = sbr.rel (%p174) target = $region28
        $region27: #{tpu_custom_call.1} parent=23 // pred_region
          %p177 = scmp.lt.s32.totalorder %s13, 1
          %s178 = scalar_select %p177, %s13, 1
          %s179 = smul.addr %s178, 8
          %s180 = scalar_lea.vmem %s0, %s179
        $region28: #{tpu_custom_call.1} parent=23 // pred_fallthru
          _
        // Predicated region
        $region29: #{tpu_custom_call.1} parent=23 // pred_check
          %p181 = pneg %p59
        $region30: #{tpu_custom_call.1} parent=23 // pred_check_branch
          %183 = sbr.rel (%p181) target = $region32
        $region31: #{tpu_custom_call.1} parent=23 // pred_region
          %p184 = scmp.lt.s32.totalorder %s13, 1
          %s185 = scalar_select %p184, %s13, 1
          %s186 = smul.addr %s185, 8
          %s187 = scalar_lea.vmem %s1, %s186
        $region32: #{tpu_custom_call.1} parent=23 // pred_fallthru
          _
      $region24: #{tpu_custom_call.1} parent=5 // pred_fallthru
        _
      %p188 = scmp.le.s32.totalorder 1, %s13
      %p189 = scmp.lt.s32.totalorder %s13, 3
      %p190 = pnand %p188, %p189
      %p191 = pneg %p190
      // Predicated region
      $region33: #{tpu_custom_call.1} parent=5 // pred_check
        _
      $region34: #{tpu_custom_call.1} parent=5 // pred_check_branch
        %193 = sbr.rel (%p190) target = $region36
      $region35: #{tpu_custom_call.1} parent=5 // pred_region
        %s194 = ssub.s32 %s13, 1
        %p195 = scmp.lt.s32.totalorder %s18, 1
        %s196 = scalar_select %p195, %s18, 1
        %s197 = smul.addr %s196, 8
        %s198 = scalar_lea.vmem %s0, %s197
        %p199 = pneg %p39
        %p200 = pneg %p36
        %p201 = scmp.lt.s32.totalorder %s18, 1
        %s202 = scalar_select %p201, %s18, 1
        %s203 = smul.addr %s202, 8
        %s204 = scalar_lea.vmem %s1, %s203
        %p205 = pneg %p65
        %p206 = pneg %p62
        %p207 = pneg %p86
        %p208 = pneg %p83
        %p209 = pneg %p107
        %p210 = pneg %p104
        %p211 = pneg %p128
        %p212 = pneg %p125
        %p213 = pneg %p149
        %p214 = pneg %p146
        %p215 = scmp.lt.s32.totalorder %s18, 1
        %s216 = scalar_select %p215, %s18, 1
        %s217 = smul.addr %s216, 8
        %s218 = scalar_lea.vmem %s0, %s217
        %p219 = scmp.lt.s32.totalorder %s18, 1
        %s220 = scalar_select %p219, %s18, 1
        %s221 = smul.addr %s220, 8
        %s222 = scalar_lea.vmem %s1, %s221
        %v223 = vld [vmem:[%s218] sm:$0xff]
        %v224 = vld [vmem:[%s222] sm:$0xff]
        %v225 = vand.u32 2147483647, %v223
        %v226 = vsub.f32 0.0, %v225
        %v227 = vmul.f32 %v226, 1.442695
        %v228 = vpow.pop %v227
        %v229 = vadd.f32 %v228, 1.0
        %v230 = vrcp.pop %v229
        %v231 = vmul.f32 %v229, %v230
        %v232 = vsub.f32 1.0, %v231
        %v233 = vmul.f32 %v230, %v232
        %v234 = vadd.f32 %v230, %v233
        %vm235 = vweird.f32 %v229
        %vm236 = vweird.f32 %v230
        %vm237 = vmor %vm235, %vm236
        %v238 = vsel %vm237, %v230, %v234
        %v239 = vand.u32 2147483647, %v229
        %vm240 = vcmp.eq.f32.partialorder %v239, 8.507059e+37
        %v241 = vand.u32 %v229, 2147483648
        %v242 = vor.u32 1.1754944e-38, %v241
        %v243 = vsel %vm240, %v242, %v238
        %vm244 = vcmp.ge.f32.partialorder %v223, 0.0
        %v245 = vmul.f32 %v228, %v243
        %v246 = vsel %vm244, %v243, %v245
        %v247 = vsub.f32 %v246, %v224
        %v248 = vand.u32 2147483647, %v247
        %v249 = vmul.f32 %v248, 30.0
        %v250 = vcvt.f32.s32.to.zero.pseudo %v249
        %vm251 = vcmp.lt.s32.totalorder %v250, 29
        %v252 = vsel %vm251, %v250, 29
        %v253 = vmax.f32 %v223, 0.0
        %v254 = vmul.f32 %v223, %v224
        %v255 = vsub.f32 %v253, %v254
        %v256 = vlog2.pop %v229
        %v257 = vmul.f32 %v256, 0.6931472
        %v258 = vadd.f32 %v255, %v257
        %v259 = vlaneseq
        %v260 = vshrl.u32 %v259, 7
        %v261 = vadd.s32 %v260, 8
        %v262 = vadd.s32 %v260, 16
        %v263 = vadd.s32 %v260, 24
        %vm264 = vcmp.eq.s32.totalorder %v252, 0
        %v265 = vsel %vm264, 1, 0
        %v266 = vcvt.s32.f32 %v265
        %vm267 = vcmask 130048
        %v268 = vsel %vm267, %v266, 0.0
        %v269 = vrot.slane %v268, 4
        %v270 = vadd.f32 %v268, %v269
        %v271 = vrot.slane %v270, 2
        %v272 = vadd.f32 %v270, %v271
        %v273 = vrot.slane %v272, 1
        %v274 = vadd.f32 %v272, %v273
        %v275 = vmul.f32 %v266, %v258
        %v276 = vsel %vm267, %v275, 0.0
        %v277 = vrot.slane %v276, 4
        %v278 = vadd.f32 %v276, %v277
        %v279 = vrot.slane %v278, 2
        %v280 = vadd.f32 %v278, %v279
        %v281 = vrot.slane %v280, 1
        %v282 = vadd.f32 %v280, %v281
        %vm283 = vcmp.eq.s32.totalorder %v260, 0
        %vm284 = vcmp.eq.s32.totalorder %v261, 0
        %vm285 = vcmp.eq.s32.totalorder %v262, 0
        %vm286 = vcmp.eq.s32.totalorder %v263, 0
        %v287 = vsel %vm283, %v274, 0.0
        %v288 = vsel %vm284, %v274, 0.0
        %v289 = vsel %vm285, %v274, 0.0
        %v290 = vsel %vm286, %v274, 0.0
        %v291 = vsel %vm283, %v282, 0.0
        %v292 = vsel %vm284, %v282, 0.0
        %v293 = vsel %vm285, %v282, 0.0
        %v294 = vsel %vm286, %v282, 0.0
        %vm295 = vcmp.eq.s32.totalorder %v252, 1
        %v296 = vsel %vm295, 1, 0
        %v297 = vcvt.s32.f32 %v296
        %v298 = vsel %vm267, %v297, 0.0
        %v299 = vrot.slane %v298, 4
        %v300 = vadd.f32 %v298, %v299
        %v301 = vrot.slane %v300, 2
        %v302 = vadd.f32 %v300, %v301
        %v303 = vrot.slane %v302, 1
        %v304 = vadd.f32 %v302, %v303
        %v305 = vmul.f32 %v297, %v258
        %v306 = vsel %vm267, %v305, 0.0
        %v307 = vrot.slane %v306, 4
        %v308 = vadd.f32 %v306, %v307
        %v309 = vrot.slane %v308, 2
        %v310 = vadd.f32 %v308, %v309
        %v311 = vrot.slane %v310, 1
        %v312 = vadd.f32 %v310, %v311
        %vm313 = vcmp.eq.s32.totalorder %v260, 1
        %vm314 = vcmp.eq.s32.totalorder %v261, 1
        %vm315 = vcmp.eq.s32.totalorder %v262, 1
        %vm316 = vcmp.eq.s32.totalorder %v263, 1
        %v317 = vsel %vm313, %v304, %v287
        %v318 = vsel %vm314, %v304, %v288
        %v319 = vsel %vm315, %v304, %v289
        %v320 = vsel %vm316, %v304, %v290
        %v321 = vsel %vm313, %v312, %v291
        %v322 = vsel %vm314, %v312, %v292
        %v323 = vsel %vm315, %v312, %v293
        %v324 = vsel %vm316, %v312, %v294
        %vm325 = vcmp.eq.s32.totalorder %v252, 2
        %v326 = vsel %vm325, 1, 0
        %v327 = vcvt.s32.f32 %v326
        %v328 = vsel %vm267, %v327, 0.0
        %v329 = vrot.slane %v328, 4
        %v330 = vadd.f32 %v328, %v329
        %v331 = vrot.slane %v330, 2
        %v332 = vadd.f32 %v330, %v331
        %v333 = vrot.slane %v332, 1
        %v334 = vadd.f32 %v332, %v333
        %v335 = vmul.f32 %v327, %v258
        %v336 = vsel %vm267, %v335, 0.0
        %v337 = vrot.slane %v336, 4
        %v338 = vadd.f32 %v336, %v337
        %v339 = vrot.slane %v338, 2
        %v340 = vadd.f32 %v338, %v339
        %v341 = vrot.slane %v340, 1
        %v342 = vadd.f32 %v340, %v341
        %vm343 = vcmp.eq.s32.totalorder %v260, 2
        %vm344 = vcmp.eq.s32.totalorder %v261, 2
        %vm345 = vcmp.eq.s32.totalorder %v262, 2
        %vm346 = vcmp.eq.s32.totalorder %v263, 2
        %v347 = vsel %vm343, %v334, %v317
        %v348 = vsel %vm344, %v334, %v318
        %v349 = vsel %vm345, %v334, %v319
        %v350 = vsel %vm346, %v334, %v320
        %v351 = vsel %vm343, %v342, %v321
        %v352 = vsel %vm344, %v342, %v322
        %v353 = vsel %vm345, %v342, %v323
        %v354 = vsel %vm346, %v342, %v324
        %vm355 = vcmp.eq.s32.totalorder %v252, 3
        %v356 = vsel %vm355, 1, 0
        %v357 = vcvt.s32.f32 %v356
        %v358 = vsel %vm267, %v357, 0.0
        %v359 = vrot.slane %v358, 4
        %v360 = vadd.f32 %v358, %v359
        %v361 = vrot.slane %v360, 2
        %v362 = vadd.f32 %v360, %v361
        %v363 = vrot.slane %v362, 1
        %v364 = vadd.f32 %v362, %v363
        %v365 = vmul.f32 %v357, %v258
        %v366 = vsel %vm267, %v365, 0.0
        %v367 = vrot.slane %v366, 4
        %v368 = vadd.f32 %v366, %v367
        %v369 = vrot.slane %v368, 2
        %v370 = vadd.f32 %v368, %v369
        %v371 = vrot.slane %v370, 1
        %v372 = vadd.f32 %v370, %v371
        %vm373 = vcmp.eq.s32.totalorder %v260, 3
        %vm374 = vcmp.eq.s32.totalorder %v261, 3
        %vm375 = vcmp.eq.s32.totalorder %v262, 3
        %vm376 = vcmp.eq.s32.totalorder %v263, 3
        %v377 = vsel %vm373, %v364, %v347
        %v378 = vsel %vm374, %v364, %v348
        %v379 = vsel %vm375, %v364, %v349
        %v380 = vsel %vm376, %v364, %v350
        %v381 = vsel %vm373, %v372, %v351
        %v382 = vsel %vm374, %v372, %v352
        %v383 = vsel %vm375, %v372, %v353
        %v384 = vsel %vm376, %v372, %v354
        %vm385 = vcmp.eq.s32.totalorder %v252, 4
        %v386 = vsel %vm385, 1, 0
        %v387 = vcvt.s32.f32 %v386
        %v388 = vsel %vm267, %v387, 0.0
        %v389 = vrot.slane %v388, 4
        %v390 = vadd.f32 %v388, %v389
        %v391 = vrot.slane %v390, 2
        %v392 = vadd.f32 %v390, %v391
        %v393 = vrot.slane %v392, 1
        %v394 = vadd.f32 %v392, %v393
        %v395 = vmul.f32 %v387, %v258
        %v396 = vsel %vm267, %v395, 0.0
        %v397 = vrot.slane %v396, 4
        %v398 = vadd.f32 %v396, %v397
        %v399 = vrot.slane %v398, 2
        %v400 = vadd.f32 %v398, %v399
        %v401 = vrot.slane %v400, 1
        %v402 = vadd.f32 %v400, %v401
        %vm403 = vcmp.eq.s32.totalorder %v260, 4
        %vm404 = vcmp.eq.s32.totalorder %v261, 4
        %vm405 = vcmp.eq.s32.totalorder %v262, 4
        %vm406 = vcmp.eq.s32.totalorder %v263, 4
        %v407 = vsel %vm403, %v394, %v377
        %v408 = vsel %vm404, %v394, %v378
        %v409 = vsel %vm405, %v394, %v379
        %v410 = vsel %vm406, %v394, %v380
        %v411 = vsel %vm403, %v402, %v381
        %v412 = vsel %vm404, %v402, %v382
        %v413 = vsel %vm405, %v402, %v383
        %v414 = vsel %vm406, %v402, %v384
        %vm415 = vcmp.eq.s32.totalorder %v252, 5
        %v416 = vsel %vm415, 1, 0
        %v417 = vcvt.s32.f32 %v416
        %v418 = vsel %vm267, %v417, 0.0
        %v419 = vrot.slane %v418, 4
        %v420 = vadd.f32 %v418, %v419
        %v421 = vrot.slane %v420, 2
        %v422 = vadd.f32 %v420, %v421
        %v423 = vrot.slane %v422, 1
        %v424 = vadd.f32 %v422, %v423
        %v425 = vmul.f32 %v417, %v258
        %v426 = vsel %vm267, %v425, 0.0
        %v427 = vrot.slane %v426, 4
        %v428 = vadd.f32 %v426, %v427
        %v429 = vrot.slane %v428, 2
        %v430 = vadd.f32 %v428, %v429
        %v431 = vrot.slane %v430, 1
        %v432 = vadd.f32 %v430, %v431
        %vm433 = vcmp.eq.s32.totalorder %v260, 5
        %vm434 = vcmp.eq.s32.totalorder %v261, 5
        %vm435 = vcmp.eq.s32.totalorder %v262, 5
        %vm436 = vcmp.eq.s32.totalorder %v263, 5
        %v437 = vsel %vm433, %v424, %v407
        %v438 = vsel %vm434, %v424, %v408
        %v439 = vsel %vm435, %v424, %v409
        %v440 = vsel %vm436, %v424, %v410
        %v441 = vsel %vm433, %v432, %v411
        %v442 = vsel %vm434, %v432, %v412
        %v443 = vsel %vm435, %v432, %v413
        %v444 = vsel %vm436, %v432, %v414
        %vm445 = vcmp.eq.s32.totalorder %v252, 6
        %v446 = vsel %vm445, 1, 0
        %v447 = vcvt.s32.f32 %v446
        %v448 = vsel %vm267, %v447, 0.0
        %v449 = vrot.slane %v448, 4
        %v450 = vadd.f32 %v448, %v449
        %v451 = vrot.slane %v450, 2
        %v452 = vadd.f32 %v450, %v451
        %v453 = vrot.slane %v452, 1
        %v454 = vadd.f32 %v452, %v453
        %v455 = vmul.f32 %v447, %v258
        %v456 = vsel %vm267, %v455, 0.0
        %v457 = vrot.slane %v456, 4
        %v458 = vadd.f32 %v456, %v457
        %v459 = vrot.slane %v458, 2
        %v460 = vadd.f32 %v458, %v459
        %v461 = vrot.slane %v460, 1
        %v462 = vadd.f32 %v460, %v461
        %vm463 = vcmp.eq.s32.totalorder %v260, 6
        %vm464 = vcmp.eq.s32.totalorder %v261, 6
        %vm465 = vcmp.eq.s32.totalorder %v262, 6
        %vm466 = vcmp.eq.s32.totalorder %v263, 6
        %v467 = vsel %vm463, %v454, %v437
        %v468 = vsel %vm464, %v454, %v438
        %v469 = vsel %vm465, %v454, %v439
        %v470 = vsel %vm466, %v454, %v440
        %v471 = vsel %vm463, %v462, %v441
        %v472 = vsel %vm464, %v462, %v442
        %v473 = vsel %vm465, %v462, %v443
        %v474 = vsel %vm466, %v462, %v444
        %vm475 = vcmp.eq.s32.totalorder %v252, 7
        %v476 = vsel %vm475, 1, 0
        %v477 = vcvt.s32.f32 %v476
        %v478 = vsel %vm267, %v477, 0.0
        %v479 = vrot.slane %v478, 4
        %v480 = vadd.f32 %v478, %v479
        %v481 = vrot.slane %v480, 2
        %v482 = vadd.f32 %v480, %v481
        %v483 = vrot.slane %v482, 1
        %v484 = vadd.f32 %v482, %v483
        %v485 = vmul.f32 %v477, %v258
        %v486 = vsel %vm267, %v485, 0.0
        %v487 = vrot.slane %v486, 4
        %v488 = vadd.f32 %v486, %v487
        %v489 = vrot.slane %v488, 2
        %v490 = vadd.f32 %v488, %v489
        %v491 = vrot.slane %v490, 1
        %v492 = vadd.f32 %v490, %v491
        %vm493 = vcmp.eq.s32.totalorder %v260, 7
        %vm494 = vcmp.eq.s32.totalorder %v261, 7
        %vm495 = vcmp.eq.s32.totalorder %v262, 7
        %vm496 = vcmp.eq.s32.totalorder %v263, 7
        %v497 = vsel %vm493, %v484, %v467
        %v498 = vsel %vm494, %v484, %v468
        %v499 = vsel %vm495, %v484, %v469
        %v500 = vsel %vm496, %v484, %v470
        %v501 = vsel %vm493, %v492, %v471
        %v502 = vsel %vm494, %v492, %v472
        %v503 = vsel %vm495, %v492, %v473
        %v504 = vsel %vm496, %v492, %v474
        %vm505 = vcmp.eq.s32.totalorder %v252, 8
        %v506 = vsel %vm505, 1, 0
        %v507 = vcvt.s32.f32 %v506
        %v508 = vsel %vm267, %v507, 0.0
        %v509 = vrot.slane %v508, 4
        %v510 = vadd.f32 %v508, %v509
        %v511 = vrot.slane %v510, 2
        %v512 = vadd.f32 %v510, %v511
        %v513 = vrot.slane %v512, 1
        %v514 = vadd.f32 %v512, %v513
        %v515 = vmul.f32 %v507, %v258
        %v516 = vsel %vm267, %v515, 0.0
        %v517 = vrot.slane %v516, 4
        %v518 = vadd.f32 %v516, %v517
        %v519 = vrot.slane %v518, 2
        %v520 = vadd.f32 %v518, %v519
        %v521 = vrot.slane %v520, 1
        %v522 = vadd.f32 %v520, %v521
        %vm523 = vcmp.eq.s32.totalorder %v260, 8
        %vm524 = vcmp.eq.s32.totalorder %v261, 8
        %vm525 = vcmp.eq.s32.totalorder %v262, 8
        %vm526 = vcmp.eq.s32.totalorder %v263, 8
        %v527 = vsel %vm523, %v514, %v497
        %v528 = vsel %vm524, %v514, %v498
        %v529 = vsel %vm525, %v514, %v499
        %v530 = vsel %vm526, %v514, %v500
        %v531 = vsel %vm523, %v522, %v501
        %v532 = vsel %vm524, %v522, %v502
        %v533 = vsel %vm525, %v522, %v503
        %v534 = vsel %vm526, %v522, %v504
        %vm535 = vcmp.eq.s32.totalorder %v252, 9
        %v536 = vsel %vm535, 1, 0
        %v537 = vcvt.s32.f32 %v536
        %v538 = vsel %vm267, %v537, 0.0
        %v539 = vrot.slane %v538, 4
        %v540 = vadd.f32 %v538, %v539
        %v541 = vrot.slane %v540, 2
        %v542 = vadd.f32 %v540, %v541
        %v543 = vrot.slane %v542, 1
        %v544 = vadd.f32 %v542, %v543
        %v545 = vmul.f32 %v537, %v258
        %v546 = vsel %vm267, %v545, 0.0
        %v547 = vrot.slane %v546, 4
        %v548 = vadd.f32 %v546, %v547
        %v549 = vrot.slane %v548, 2
        %v550 = vadd.f32 %v548, %v549
        %v551 = vrot.slane %v550, 1
        %v552 = vadd.f32 %v550, %v551
        %vm553 = vcmp.eq.s32.totalorder %v260, 9
        %vm554 = vcmp.eq.s32.totalorder %v261, 9
        %vm555 = vcmp.eq.s32.totalorder %v262, 9
        %vm556 = vcmp.eq.s32.totalorder %v263, 9
        %v557 = vsel %vm553, %v544, %v527
        %v558 = vsel %vm554, %v544, %v528
        %v559 = vsel %vm555, %v544, %v529
        %v560 = vsel %vm556, %v544, %v530
        %v561 = vsel %vm553, %v552, %v531
        %v562 = vsel %vm554, %v552, %v532
        %v563 = vsel %vm555, %v552, %v533
        %v564 = vsel %vm556, %v552, %v534
        %vm565 = vcmp.eq.s32.totalorder %v252, 10
        %v566 = vsel %vm565, 1, 0
        %v567 = vcvt.s32.f32 %v566
        %v568 = vsel %vm267, %v567, 0.0
        %v569 = vrot.slane %v568, 4
        %v570 = vadd.f32 %v568, %v569
        %v571 = vrot.slane %v570, 2
        %v572 = vadd.f32 %v570, %v571
        %v573 = vrot.slane %v572, 1
        %v574 = vadd.f32 %v572, %v573
        %v575 = vmul.f32 %v567, %v258
        %v576 = vsel %vm267, %v575, 0.0
        %v577 = vrot.slane %v576, 4
        %v578 = vadd.f32 %v576, %v577
        %v579 = vrot.slane %v578, 2
        %v580 = vadd.f32 %v578, %v579
        %v581 = vrot.slane %v580, 1
        %v582 = vadd.f32 %v580, %v581
        %vm583 = vcmp.eq.s32.totalorder %v260, 10
        %vm584 = vcmp.eq.s32.totalorder %v261, 10
        %vm585 = vcmp.eq.s32.totalorder %v262, 10
        %vm586 = vcmp.eq.s32.totalorder %v263, 10
        %v587 = vsel %vm583, %v574, %v557
        %v588 = vsel %vm584, %v574, %v558
        %v589 = vsel %vm585, %v574, %v559
        %v590 = vsel %vm586, %v574, %v560
        %v591 = vsel %vm583, %v582, %v561
        %v592 = vsel %vm584, %v582, %v562
        %v593 = vsel %vm585, %v582, %v563
        %v594 = vsel %vm586, %v582, %v564
        %vm595 = vcmp.eq.s32.totalorder %v252, 11
        %v596 = vsel %vm595, 1, 0
        %v597 = vcvt.s32.f32 %v596
        %v598 = vsel %vm267, %v597, 0.0
        %v599 = vrot.slane %v598, 4
        %v600 = vadd.f32 %v598, %v599
        %v601 = vrot.slane %v600, 2
        %v602 = vadd.f32 %v600, %v601
        %v603 = vrot.slane %v602, 1
        %v604 = vadd.f32 %v602, %v603
        %v605 = vmul.f32 %v597, %v258
        %v606 = vsel %vm267, %v605, 0.0
        %v607 = vrot.slane %v606, 4
        %v608 = vadd.f32 %v606, %v607
        %v609 = vrot.slane %v608, 2
        %v610 = vadd.f32 %v608, %v609
        %v611 = vrot.slane %v610, 1
        %v612 = vadd.f32 %v610, %v611
        %vm613 = vcmp.eq.s32.totalorder %v260, 11
        %vm614 = vcmp.eq.s32.totalorder %v261, 11
        %vm615 = vcmp.eq.s32.totalorder %v262, 11
        %vm616 = vcmp.eq.s32.totalorder %v263, 11
        %v617 = vsel %vm613, %v604, %v587
        %v618 = vsel %vm614, %v604, %v588
        %v619 = vsel %vm615, %v604, %v589
        %v620 = vsel %vm616, %v604, %v590
        %v621 = vsel %vm613, %v612, %v591
        %v622 = vsel %vm614, %v612, %v592
        %v623 = vsel %vm615, %v612, %v593
        %v624 = vsel %vm616, %v612, %v594
        %vm625 = vcmp.eq.s32.totalorder %v252, 12
        %v626 = vsel %vm625, 1, 0
        %v627 = vcvt.s32.f32 %v626
        %v628 = vsel %vm267, %v627, 0.0
        %v629 = vrot.slane %v628, 4
        %v630 = vadd.f32 %v628, %v629
        %v631 = vrot.slane %v630, 2
        %v632 = vadd.f32 %v630, %v631
        %v633 = vrot.slane %v632, 1
        %v634 = vadd.f32 %v632, %v633
        %v635 = vmul.f32 %v627, %v258
        %v636 = vsel %vm267, %v635, 0.0
        %v637 = vrot.slane %v636, 4
        %v638 = vadd.f32 %v636, %v637
        %v639 = vrot.slane %v638, 2
        %v640 = vadd.f32 %v638, %v639
        %v641 = vrot.slane %v640, 1
        %v642 = vadd.f32 %v640, %v641
        %vm643 = vcmp.eq.s32.totalorder %v260, 12
        %vm644 = vcmp.eq.s32.totalorder %v261, 12
        %vm645 = vcmp.eq.s32.totalorder %v262, 12
        %vm646 = vcmp.eq.s32.totalorder %v263, 12
        %v647 = vsel %vm643, %v634, %v617
        %v648 = vsel %vm644, %v634, %v618
        %v649 = vsel %vm645, %v634, %v619
        %v650 = vsel %vm646, %v634, %v620
        %v651 = vsel %vm643, %v642, %v621
        %v652 = vsel %vm644, %v642, %v622
        %v653 = vsel %vm645, %v642, %v623
        %v654 = vsel %vm646, %v642, %v624
        %vm655 = vcmp.eq.s32.totalorder %v252, 13
        %v656 = vsel %vm655, 1, 0
        %v657 = vcvt.s32.f32 %v656
        %v658 = vsel %vm267, %v657, 0.0
        %v659 = vrot.slane %v658, 4
        %v660 = vadd.f32 %v658, %v659
        %v661 = vrot.slane %v660, 2
        %v662 = vadd.f32 %v660, %v661
        %v663 = vrot.slane %v662, 1
        %v664 = vadd.f32 %v662, %v663
        %v665 = vmul.f32 %v657, %v258
        %v666 = vsel %vm267, %v665, 0.0
        %v667 = vrot.slane %v666, 4
        %v668 = vadd.f32 %v666, %v667
        %v669 = vrot.slane %v668, 2
        %v670 = vadd.f32 %v668, %v669
        %v671 = vrot.slane %v670, 1
        %v672 = vadd.f32 %v670, %v671
        %vm673 = vcmp.eq.s32.totalorder %v260, 13
        %vm674 = vcmp.eq.s32.totalorder %v261, 13
        %vm675 = vcmp.eq.s32.totalorder %v262, 13
        %vm676 = vcmp.eq.s32.totalorder %v263, 13
        %v677 = vsel %vm673, %v664, %v647
        %v678 = vsel %vm674, %v664, %v648
        %v679 = vsel %vm675, %v664, %v649
        %v680 = vsel %vm676, %v664, %v650
        %v681 = vsel %vm673, %v672, %v651
        %v682 = vsel %vm674, %v672, %v652
        %v683 = vsel %vm675, %v672, %v653
        %v684 = vsel %vm676, %v672, %v654
        %vm685 = vcmp.eq.s32.totalorder %v252, 14
        %v686 = vsel %vm685, 1, 0
        %v687 = vcvt.s32.f32 %v686
        %v688 = vsel %vm267, %v687, 0.0
        %v689 = vrot.slane %v688, 4
        %v690 = vadd.f32 %v688, %v689
        %v691 = vrot.slane %v690, 2
        %v692 = vadd.f32 %v690, %v691
        %v693 = vrot.slane %v692, 1
        %v694 = vadd.f32 %v692, %v693
        %v695 = vmul.f32 %v687, %v258
        %v696 = vsel %vm267, %v695, 0.0
        %v697 = vrot.slane %v696, 4
        %v698 = vadd.f32 %v696, %v697
        %v699 = vrot.slane %v698, 2
        %v700 = vadd.f32 %v698, %v699
        %v701 = vrot.slane %v700, 1
        %v702 = vadd.f32 %v700, %v701
        %vm703 = vcmp.eq.s32.totalorder %v260, 14
        %vm704 = vcmp.eq.s32.totalorder %v261, 14
        %vm705 = vcmp.eq.s32.totalorder %v262, 14
        %vm706 = vcmp.eq.s32.totalorder %v263, 14
        %v707 = vsel %vm703, %v694, %v677
        %v708 = vsel %vm704, %v694, %v678
        %v709 = vsel %vm705, %v694, %v679
        %v710 = vsel %vm706, %v694, %v680
        %v711 = vsel %vm703, %v702, %v681
        %v712 = vsel %vm704, %v702, %v682
        %v713 = vsel %vm705, %v702, %v683
        %v714 = vsel %vm706, %v702, %v684
        %vm715 = vcmp.eq.s32.totalorder %v252, 15
        %v716 = vsel %vm715, 1, 0
        %v717 = vcvt.s32.f32 %v716
        %v718 = vsel %vm267, %v717, 0.0
        %v719 = vrot.slane %v718, 4
        %v720 = vadd.f32 %v718, %v719
        %v721 = vrot.slane %v720, 2
        %v722 = vadd.f32 %v720, %v721
        %v723 = vrot.slane %v722, 1
        %v724 = vadd.f32 %v722, %v723
        %v725 = vmul.f32 %v717, %v258
        %v726 = vsel %vm267, %v725, 0.0
        %v727 = vrot.slane %v726, 4
        %v728 = vadd.f32 %v726, %v727
        %v729 = vrot.slane %v728, 2
        %v730 = vadd.f32 %v728, %v729
        %v731 = vrot.slane %v730, 1
        %v732 = vadd.f32 %v730, %v731
        %vm733 = vcmp.eq.s32.totalorder %v260, 15
        %vm734 = vcmp.eq.s32.totalorder %v261, 15
        %vm735 = vcmp.eq.s32.totalorder %v262, 15
        %vm736 = vcmp.eq.s32.totalorder %v263, 15
        %v737 = vsel %vm733, %v724, %v707
        %v738 = vsel %vm734, %v724, %v708
        %v739 = vsel %vm735, %v724, %v709
        %v740 = vsel %vm736, %v724, %v710
        %v741 = vsel %vm733, %v732, %v711
        %v742 = vsel %vm734, %v732, %v712
        %v743 = vsel %vm735, %v732, %v713
        %v744 = vsel %vm736, %v732, %v714
        %vm745 = vcmp.eq.s32.totalorder %v252, 16
        %v746 = vsel %vm745, 1, 0
        %v747 = vcvt.s32.f32 %v746
        %v748 = vsel %vm267, %v747, 0.0
        %v749 = vrot.slane %v748, 4
        %v750 = vadd.f32 %v748, %v749
        %v751 = vrot.slane %v750, 2
        %v752 = vadd.f32 %v750, %v751
        %v753 = vrot.slane %v752, 1
        %v754 = vadd.f32 %v752, %v753
        %v755 = vmul.f32 %v747, %v258
        %v756 = vsel %vm267, %v755, 0.0
        %v757 = vrot.slane %v756, 4
        %v758 = vadd.f32 %v756, %v757
        %v759 = vrot.slane %v758, 2
        %v760 = vadd.f32 %v758, %v759
        %v761 = vrot.slane %v760, 1
        %v762 = vadd.f32 %v760, %v761
        %vm763 = vcmp.eq.s32.totalorder %v260, 16
        %vm764 = vcmp.eq.s32.totalorder %v261, 16
        %vm765 = vcmp.eq.s32.totalorder %v262, 16
        %vm766 = vcmp.eq.s32.totalorder %v263, 16
        %v767 = vsel %vm763, %v754, %v737
        %v768 = vsel %vm764, %v754, %v738
        %v769 = vsel %vm765, %v754, %v739
        %v770 = vsel %vm766, %v754, %v740
        %v771 = vsel %vm763, %v762, %v741
        %v772 = vsel %vm764, %v762, %v742
        %v773 = vsel %vm765, %v762, %v743
        %v774 = vsel %vm766, %v762, %v744
        %vm775 = vcmp.eq.s32.totalorder %v252, 17
        %v776 = vsel %vm775, 1, 0
        %v777 = vcvt.s32.f32 %v776
        %v778 = vsel %vm267, %v777, 0.0
        %v779 = vrot.slane %v778, 4
        %v780 = vadd.f32 %v778, %v779
        %v781 = vrot.slane %v780, 2
        %v782 = vadd.f32 %v780, %v781
        %v783 = vrot.slane %v782, 1
        %v784 = vadd.f32 %v782, %v783
        %v785 = vmul.f32 %v777, %v258
        %v786 = vsel %vm267, %v785, 0.0
        %v787 = vrot.slane %v786, 4
        %v788 = vadd.f32 %v786, %v787
        %v789 = vrot.slane %v788, 2
        %v790 = vadd.f32 %v788, %v789
        %v791 = vrot.slane %v790, 1
        %v792 = vadd.f32 %v790, %v791
        %vm793 = vcmp.eq.s32.totalorder %v260, 17
        %vm794 = vcmp.eq.s32.totalorder %v261, 17
        %vm795 = vcmp.eq.s32.totalorder %v262, 17
        %vm796 = vcmp.eq.s32.totalorder %v263, 17
        %v797 = vsel %vm793, %v784, %v767
        %v798 = vsel %vm794, %v784, %v768
        %v799 = vsel %vm795, %v784, %v769
        %v800 = vsel %vm796, %v784, %v770
        %v801 = vsel %vm793, %v792, %v771
        %v802 = vsel %vm794, %v792, %v772
        %v803 = vsel %vm795, %v792, %v773
        %v804 = vsel %vm796, %v792, %v774
        %vm805 = vcmp.eq.s32.totalorder %v252, 18
        %v806 = vsel %vm805, 1, 0
        %v807 = vcvt.s32.f32 %v806
        %v808 = vsel %vm267, %v807, 0.0
        %v809 = vrot.slane %v808, 4
        %v810 = vadd.f32 %v808, %v809
        %v811 = vrot.slane %v810, 2
        %v812 = vadd.f32 %v810, %v811
        %v813 = vrot.slane %v812, 1
        %v814 = vadd.f32 %v812, %v813
        %v815 = vmul.f32 %v807, %v258
        %v816 = vsel %vm267, %v815, 0.0
        %v817 = vrot.slane %v816, 4
        %v818 = vadd.f32 %v816, %v817
        %v819 = vrot.slane %v818, 2
        %v820 = vadd.f32 %v818, %v819
        %v821 = vrot.slane %v820, 1
        %v822 = vadd.f32 %v820, %v821
        %vm823 = vcmp.eq.s32.totalorder %v260, 18
        %vm824 = vcmp.eq.s32.totalorder %v261, 18
        %vm825 = vcmp.eq.s32.totalorder %v262, 18
        %vm826 = vcmp.eq.s32.totalorder %v263, 18
        %v827 = vsel %vm823, %v814, %v797
        %v828 = vsel %vm824, %v814, %v798
        %v829 = vsel %vm825, %v814, %v799
        %v830 = vsel %vm826, %v814, %v800
        %v831 = vsel %vm823, %v822, %v801
        %v832 = vsel %vm824, %v822, %v802
        %v833 = vsel %vm825, %v822, %v803
        %v834 = vsel %vm826, %v822, %v804
        %vm835 = vcmp.eq.s32.totalorder %v252, 19
        %v836 = vsel %vm835, 1, 0
        %v837 = vcvt.s32.f32 %v836
        %v838 = vsel %vm267, %v837, 0.0
        %v839 = vrot.slane %v838, 4
        %v840 = vadd.f32 %v838, %v839
        %v841 = vrot.slane %v840, 2
        %v842 = vadd.f32 %v840, %v841
        %v843 = vrot.slane %v842, 1
        %v844 = vadd.f32 %v842, %v843
        %v845 = vmul.f32 %v837, %v258
        %v846 = vsel %vm267, %v845, 0.0
        %v847 = vrot.slane %v846, 4
        %v848 = vadd.f32 %v846, %v847
        %v849 = vrot.slane %v848, 2
        %v850 = vadd.f32 %v848, %v849
        %v851 = vrot.slane %v850, 1
        %v852 = vadd.f32 %v850, %v851
        %vm853 = vcmp.eq.s32.totalorder %v260, 19
        %vm854 = vcmp.eq.s32.totalorder %v261, 19
        %vm855 = vcmp.eq.s32.totalorder %v262, 19
        %vm856 = vcmp.eq.s32.totalorder %v263, 19
        %v857 = vsel %vm853, %v844, %v827
        %v858 = vsel %vm854, %v844, %v828
        %v859 = vsel %vm855, %v844, %v829
        %v860 = vsel %vm856, %v844, %v830
        %v861 = vsel %vm853, %v852, %v831
        %v862 = vsel %vm854, %v852, %v832
        %v863 = vsel %vm855, %v852, %v833
        %v864 = vsel %vm856, %v852, %v834
        %vm865 = vcmp.eq.s32.totalorder %v252, 20
        %v866 = vsel %vm865, 1, 0
        %v867 = vcvt.s32.f32 %v866
        %v868 = vsel %vm267, %v867, 0.0
        %v869 = vrot.slane %v868, 4
        %v870 = vadd.f32 %v868, %v869
        %v871 = vrot.slane %v870, 2
        %v872 = vadd.f32 %v870, %v871
        %v873 = vrot.slane %v872, 1
        %v874 = vadd.f32 %v872, %v873
        %v875 = vmul.f32 %v867, %v258
        %v876 = vsel %vm267, %v875, 0.0
        %v877 = vrot.slane %v876, 4
        %v878 = vadd.f32 %v876, %v877
        %v879 = vrot.slane %v878, 2
        %v880 = vadd.f32 %v878, %v879
        %v881 = vrot.slane %v880, 1
        %v882 = vadd.f32 %v880, %v881
        %vm883 = vcmp.eq.s32.totalorder %v260, 20
        %vm884 = vcmp.eq.s32.totalorder %v261, 20
        %vm885 = vcmp.eq.s32.totalorder %v262, 20
        %vm886 = vcmp.eq.s32.totalorder %v263, 20
        %v887 = vsel %vm883, %v874, %v857
        %v888 = vsel %vm884, %v874, %v858
        %v889 = vsel %vm885, %v874, %v859
        %v890 = vsel %vm886, %v874, %v860
        %v891 = vsel %vm883, %v882, %v861
        %v892 = vsel %vm884, %v882, %v862
        %v893 = vsel %vm885, %v882, %v863
        %v894 = vsel %vm886, %v882, %v864
        %vm895 = vcmp.eq.s32.totalorder %v252, 21
        %v896 = vsel %vm895, 1, 0
        %v897 = vcvt.s32.f32 %v896
        %v898 = vsel %vm267, %v897, 0.0
        %v899 = vrot.slane %v898, 4
        %v900 = vadd.f32 %v898, %v899
        %v901 = vrot.slane %v900, 2
        %v902 = vadd.f32 %v900, %v901
        %v903 = vrot.slane %v902, 1
        %v904 = vadd.f32 %v902, %v903
        %v905 = vmul.f32 %v897, %v258
        %v906 = vsel %vm267, %v905, 0.0
        %v907 = vrot.slane %v906, 4
        %v908 = vadd.f32 %v906, %v907
        %v909 = vrot.slane %v908, 2
        %v910 = vadd.f32 %v908, %v909
        %v911 = vrot.slane %v910, 1
        %v912 = vadd.f32 %v910, %v911
        %vm913 = vcmp.eq.s32.totalorder %v260, 21
        %vm914 = vcmp.eq.s32.totalorder %v261, 21
        %vm915 = vcmp.eq.s32.totalorder %v262, 21
        %vm916 = vcmp.eq.s32.totalorder %v263, 21
        %v917 = vsel %vm913, %v904, %v887
        %v918 = vsel %vm914, %v904, %v888
        %v919 = vsel %vm915, %v904, %v889
        %v920 = vsel %vm916, %v904, %v890
        %v921 = vsel %vm913, %v912, %v891
        %v922 = vsel %vm914, %v912, %v892
        %v923 = vsel %vm915, %v912, %v893
        %v924 = vsel %vm916, %v912, %v894
        %vm925 = vcmp.eq.s32.totalorder %v252, 22
        %v926 = vsel %vm925, 1, 0
        %v927 = vcvt.s32.f32 %v926
        %v928 = vsel %vm267, %v927, 0.0
        %v929 = vrot.slane %v928, 4
        %v930 = vadd.f32 %v928, %v929
        %v931 = vrot.slane %v930, 2
        %v932 = vadd.f32 %v930, %v931
        %v933 = vrot.slane %v932, 1
        %v934 = vadd.f32 %v932, %v933
        %v935 = vmul.f32 %v927, %v258
        %v936 = vsel %vm267, %v935, 0.0
        %v937 = vrot.slane %v936, 4
        %v938 = vadd.f32 %v936, %v937
        %v939 = vrot.slane %v938, 2
        %v940 = vadd.f32 %v938, %v939
        %v941 = vrot.slane %v940, 1
        %v942 = vadd.f32 %v940, %v941
        %vm943 = vcmp.eq.s32.totalorder %v260, 22
        %vm944 = vcmp.eq.s32.totalorder %v261, 22
        %vm945 = vcmp.eq.s32.totalorder %v262, 22
        %vm946 = vcmp.eq.s32.totalorder %v263, 22
        %v947 = vsel %vm943, %v934, %v917
        %v948 = vsel %vm944, %v934, %v918
        %v949 = vsel %vm945, %v934, %v919
        %v950 = vsel %vm946, %v934, %v920
        %v951 = vsel %vm943, %v942, %v921
        %v952 = vsel %vm944, %v942, %v922
        %v953 = vsel %vm945, %v942, %v923
        %v954 = vsel %vm946, %v942, %v924
        %vm955 = vcmp.eq.s32.totalorder %v252, 23
        %v956 = vsel %vm955, 1, 0
        %v957 = vcvt.s32.f32 %v956
        %v958 = vsel %vm267, %v957, 0.0
        %v959 = vrot.slane %v958, 4
        %v960 = vadd.f32 %v958, %v959
        %v961 = vrot.slane %v960, 2
        %v962 = vadd.f32 %v960, %v961
        %v963 = vrot.slane %v962, 1
        %v964 = vadd.f32 %v962, %v963
        %v965 = vmul.f32 %v957, %v258
        %v966 = vsel %vm267, %v965, 0.0
        %v967 = vrot.slane %v966, 4
        %v968 = vadd.f32 %v966, %v967
        %v969 = vrot.slane %v968, 2
        %v970 = vadd.f32 %v968, %v969
        %v971 = vrot.slane %v970, 1
        %v972 = vadd.f32 %v970, %v971
        %vm973 = vcmp.eq.s32.totalorder %v260, 23
        %vm974 = vcmp.eq.s32.totalorder %v261, 23
        %vm975 = vcmp.eq.s32.totalorder %v262, 23
        %vm976 = vcmp.eq.s32.totalorder %v263, 23
        %v977 = vsel %vm973, %v964, %v947
        %v978 = vsel %vm974, %v964, %v948
        %v979 = vsel %vm975, %v964, %v949
        %v980 = vsel %vm976, %v964, %v950
        %v981 = vsel %vm973, %v972, %v951
        %v982 = vsel %vm974, %v972, %v952
        %v983 = vsel %vm975, %v972, %v953
        %v984 = vsel %vm976, %v972, %v954
        %vm985 = vcmp.eq.s32.totalorder %v252, 24
        %v986 = vsel %vm985, 1, 0
        %v987 = vcvt.s32.f32 %v986
        %v988 = vsel %vm267, %v987, 0.0
        %v989 = vrot.slane %v988, 4
        %v990 = vadd.f32 %v988, %v989
        %v991 = vrot.slane %v990, 2
        %v992 = vadd.f32 %v990, %v991
        %v993 = vrot.slane %v992, 1
        %v994 = vadd.f32 %v992, %v993
        %v995 = vmul.f32 %v987, %v258
        %v996 = vsel %vm267, %v995, 0.0
        %v997 = vrot.slane %v996, 4
        %v998 = vadd.f32 %v996, %v997
        %v999 = vrot.slane %v998, 2
        %v1000 = vadd.f32 %v998, %v999
        %v1001 = vrot.slane %v1000, 1
        %v1002 = vadd.f32 %v1000, %v1001
        %vm1003 = vcmp.eq.s32.totalorder %v260, 24
        %vm1004 = vcmp.eq.s32.totalorder %v261, 24
        %vm1005 = vcmp.eq.s32.totalorder %v262, 24
        %vm1006 = vcmp.eq.s32.totalorder %v263, 24
        %v1007 = vsel %vm1003, %v994, %v977
        %v1008 = vsel %vm1004, %v994, %v978
        %v1009 = vsel %vm1005, %v994, %v979
        %v1010 = vsel %vm1006, %v994, %v980
        %v1011 = vsel %vm1003, %v1002, %v981
        %v1012 = vsel %vm1004, %v1002, %v982
        %v1013 = vsel %vm1005, %v1002, %v983
        %v1014 = vsel %vm1006, %v1002, %v984
        %vm1015 = vcmp.eq.s32.totalorder %v252, 25
        %v1016 = vsel %vm1015, 1, 0
        %v1017 = vcvt.s32.f32 %v1016
        %v1018 = vsel %vm267, %v1017, 0.0
        %v1019 = vrot.slane %v1018, 4
        %v1020 = vadd.f32 %v1018, %v1019
        %v1021 = vrot.slane %v1020, 2
        %v1022 = vadd.f32 %v1020, %v1021
        %v1023 = vrot.slane %v1022, 1
        %v1024 = vadd.f32 %v1022, %v1023
        %v1025 = vmul.f32 %v1017, %v258
        %v1026 = vsel %vm267, %v1025, 0.0
        %v1027 = vrot.slane %v1026, 4
        %v1028 = vadd.f32 %v1026, %v1027
        %v1029 = vrot.slane %v1028, 2
        %v1030 = vadd.f32 %v1028, %v1029
        %v1031 = vrot.slane %v1030, 1
        %v1032 = vadd.f32 %v1030, %v1031
        %vm1033 = vcmp.eq.s32.totalorder %v260, 25
        %vm1034 = vcmp.eq.s32.totalorder %v261, 25
        %vm1035 = vcmp.eq.s32.totalorder %v262, 25
        %vm1036 = vcmp.eq.s32.totalorder %v263, 25
        %v1037 = vsel %vm1033, %v1024, %v1007
        %v1038 = vsel %vm1034, %v1024, %v1008
        %v1039 = vsel %vm1035, %v1024, %v1009
        %v1040 = vsel %vm1036, %v1024, %v1010
        %v1041 = vsel %vm1033, %v1032, %v1011
        %v1042 = vsel %vm1034, %v1032, %v1012
        %v1043 = vsel %vm1035, %v1032, %v1013
        %v1044 = vsel %vm1036, %v1032, %v1014
        %vm1045 = vcmp.eq.s32.totalorder %v252, 26
        %v1046 = vsel %vm1045, 1, 0
        %v1047 = vcvt.s32.f32 %v1046
        %v1048 = vsel %vm267, %v1047, 0.0
        %v1049 = vrot.slane %v1048, 4
        %v1050 = vadd.f32 %v1048, %v1049
        %v1051 = vrot.slane %v1050, 2
        %v1052 = vadd.f32 %v1050, %v1051
        %v1053 = vrot.slane %v1052, 1
        %v1054 = vadd.f32 %v1052, %v1053
        %v1055 = vmul.f32 %v1047, %v258
        %v1056 = vsel %vm267, %v1055, 0.0
        %v1057 = vrot.slane %v1056, 4
        %v1058 = vadd.f32 %v1056, %v1057
        %v1059 = vrot.slane %v1058, 2
        %v1060 = vadd.f32 %v1058, %v1059
        %v1061 = vrot.slane %v1060, 1
        %v1062 = vadd.f32 %v1060, %v1061
        %vm1063 = vcmp.eq.s32.totalorder %v260, 26
        %vm1064 = vcmp.eq.s32.totalorder %v261, 26
        %vm1065 = vcmp.eq.s32.totalorder %v262, 26
        %vm1066 = vcmp.eq.s32.totalorder %v263, 26
        %v1067 = vsel %vm1063, %v1054, %v1037
        %v1068 = vsel %vm1064, %v1054, %v1038
        %v1069 = vsel %vm1065, %v1054, %v1039
        %v1070 = vsel %vm1066, %v1054, %v1040
        %v1071 = vsel %vm1063, %v1062, %v1041
        %v1072 = vsel %vm1064, %v1062, %v1042
        %v1073 = vsel %vm1065, %v1062, %v1043
        %v1074 = vsel %vm1066, %v1062, %v1044
        %vm1075 = vcmp.eq.s32.totalorder %v252, 27
        %v1076 = vsel %vm1075, 1, 0
        %v1077 = vcvt.s32.f32 %v1076
        %v1078 = vsel %vm267, %v1077, 0.0
        %v1079 = vrot.slane %v1078, 4
        %v1080 = vadd.f32 %v1078, %v1079
        %v1081 = vrot.slane %v1080, 2
        %v1082 = vadd.f32 %v1080, %v1081
        %v1083 = vrot.slane %v1082, 1
        %v1084 = vadd.f32 %v1082, %v1083
        %v1085 = vmul.f32 %v1077, %v258
        %v1086 = vsel %vm267, %v1085, 0.0
        %v1087 = vrot.slane %v1086, 4
        %v1088 = vadd.f32 %v1086, %v1087
        %v1089 = vrot.slane %v1088, 2
        %v1090 = vadd.f32 %v1088, %v1089
        %v1091 = vrot.slane %v1090, 1
        %v1092 = vadd.f32 %v1090, %v1091
        %vm1093 = vcmp.eq.s32.totalorder %v260, 27
        %vm1094 = vcmp.eq.s32.totalorder %v261, 27
        %vm1095 = vcmp.eq.s32.totalorder %v262, 27
        %vm1096 = vcmp.eq.s32.totalorder %v263, 27
        %v1097 = vsel %vm1093, %v1084, %v1067
        %v1098 = vsel %vm1094, %v1084, %v1068
        %v1099 = vsel %vm1095, %v1084, %v1069
        %v1100 = vsel %vm1096, %v1084, %v1070
        %v1101 = vsel %vm1093, %v1092, %v1071
        %v1102 = vsel %vm1094, %v1092, %v1072
        %v1103 = vsel %vm1095, %v1092, %v1073
        %v1104 = vsel %vm1096, %v1092, %v1074
        %vm1105 = vcmp.eq.s32.totalorder %v252, 28
        %v1106 = vsel %vm1105, 1, 0
        %v1107 = vcvt.s32.f32 %v1106
        %v1108 = vsel %vm267, %v1107, 0.0
        %v1109 = vrot.slane %v1108, 4
        %v1110 = vadd.f32 %v1108, %v1109
        %v1111 = vrot.slane %v1110, 2
        %v1112 = vadd.f32 %v1110, %v1111
        %v1113 = vrot.slane %v1112, 1
        %v1114 = vadd.f32 %v1112, %v1113
        %v1115 = vmul.f32 %v1107, %v258
        %v1116 = vsel %vm267, %v1115, 0.0
        %v1117 = vrot.slane %v1116, 4
        %v1118 = vadd.f32 %v1116, %v1117
        %v1119 = vrot.slane %v1118, 2
        %v1120 = vadd.f32 %v1118, %v1119
        %v1121 = vrot.slane %v1120, 1
        %v1122 = vadd.f32 %v1120, %v1121
        %vm1123 = vcmp.eq.s32.totalorder %v260, 28
        %vm1124 = vcmp.eq.s32.totalorder %v261, 28
        %vm1125 = vcmp.eq.s32.totalorder %v262, 28
        %vm1126 = vcmp.eq.s32.totalorder %v263, 28
        %v1127 = vsel %vm1123, %v1114, %v1097
        %v1128 = vsel %vm1124, %v1114, %v1098
        %v1129 = vsel %vm1125, %v1114, %v1099
        %v1130 = vsel %vm1126, %v1114, %v1100
        %v1131 = vsel %vm1123, %v1122, %v1101
        %v1132 = vsel %vm1124, %v1122, %v1102
        %v1133 = vsel %vm1125, %v1122, %v1103
        %v1134 = vsel %vm1126, %v1122, %v1104
        %vm1135 = vcmp.eq.s32.totalorder %v252, 29
        %v1136 = vsel %vm1135, 1, 0
        %v1137 = vcvt.s32.f32 %v1136
        %v1138 = vsel %vm267, %v1137, 0.0
        %v1139 = vrot.slane %v1138, 4
        %v1140 = vadd.f32 %v1138, %v1139
        %v1141 = vrot.slane %v1140, 2
        %v1142 = vadd.f32 %v1140, %v1141
        %v1143 = vrot.slane %v1142, 1
        %v1144 = vadd.f32 %v1142, %v1143
        %v1145 = vmul.f32 %v1137, %v258
        %v1146 = vsel %vm267, %v1145, 0.0
        %v1147 = vrot.slane %v1146, 4
        %v1148 = vadd.f32 %v1146, %v1147
        %v1149 = vrot.slane %v1148, 2
        %v1150 = vadd.f32 %v1148, %v1149
        %v1151 = vrot.slane %v1150, 1
        %v1152 = vadd.f32 %v1150, %v1151
        %vm1153 = vcmp.eq.s32.totalorder %v260, 29
        %vm1154 = vcmp.eq.s32.totalorder %v261, 29
        %vm1155 = vcmp.eq.s32.totalorder %v262, 29
        %vm1156 = vcmp.eq.s32.totalorder %v263, 29
        %v1157 = vsel %vm1153, %v1144, %v1127
        %v1158 = vsel %vm1154, %v1144, %v1128
        %v1159 = vsel %vm1155, %v1144, %v1129
        %v1160 = vsel %vm1156, %v1144, %v1130
        %v1161 = vsel %vm1153, %v1152, %v1131
        %v1162 = vsel %vm1154, %v1152, %v1132
        %v1163 = vsel %vm1155, %v1152, %v1133
        %v1164 = vsel %vm1156, %v1152, %v1134
        %p1165 = scmp.eq.s32.totalorder %s18, 0
        // Predicated region
        $region37: #{tpu_custom_call.1} parent=35 // pred_check
          %p1166 = pneg %p1165
        $region38: #{tpu_custom_call.1} parent=35 // pred_check_branch
          %1168 = sbr.rel (%p1166) target = $region40
        $region39: #{tpu_custom_call.1} parent=35 // pred_region
          %1169 = vst.msk [vmem:[#allocation2] sm:$0xff] %vm267, 0.0
          %1170 = vst.msk [vmem:[#allocation2 + $0x8] sm:$0xff] %vm267, 0.0
          %1171 = vst.msk [vmem:[#allocation2 + $0x10] sm:$0xff] %vm267, 0.0
          %vm1172 = vcmask 128000
          %1173 = vst.msk [vmem:[#allocation2 + $0x18] sm:$0x3f] %vm1172, 0.0
          %1174 = vst.msk [vmem:[#allocation3] sm:$0xff] %vm267, 0.0
          %1175 = vst.msk [vmem:[#allocation3 + $0x8] sm:$0xff] %vm267, 0.0
          %1176 = vst.msk [vmem:[#allocation3 + $0x10] sm:$0xff] %vm267, 0.0
          %1177 = vst.msk [vmem:[#allocation3 + $0x18] sm:$0x3f] %vm1172, 0.0
        $region40: #{tpu_custom_call.1} parent=35 // pred_fallthru
          _
        %v1178 = vld [vmem:[#allocation2] sm:$0xff]
        %v1179 = vld [vmem:[#allocation2 + $0x8] sm:$0xff]
        %v1180 = vld [vmem:[#allocation2 + $0x10] sm:$0xff]
        %v1181 = vld [vmem:[#allocation2 + $0x18] sm:$0x3f]
        %v1182 = vadd.f32 %v1178, %v1157
        %v1183 = vadd.f32 %v1179, %v1158
        %v1184 = vadd.f32 %v1180, %v1159
        %v1185 = vadd.f32 %v1181, %v1160
        %1186 = vst.msk [vmem:[#allocation2] sm:$0xff] %vm267, %v1182
        %1187 = vst.msk [vmem:[#allocation2 + $0x8] sm:$0xff] %vm267, %v1183
        %1188 = vst.msk [vmem:[#allocation2 + $0x10] sm:$0xff] %vm267, %v1184
        %vm1189 = vcmask 128000
        %1190 = vst.msk [vmem:[#allocation2 + $0x18] sm:$0x3f] %vm1189, %v1185
        %v1191 = vld [vmem:[#allocation3] sm:$0xff]
        %v1192 = vld [vmem:[#allocation3 + $0x8] sm:$0xff]
        %v1193 = vld [vmem:[#allocation3 + $0x10] sm:$0xff]
        %v1194 = vld [vmem:[#allocation3 + $0x18] sm:$0x3f]
        %v1195 = vadd.f32 %v1191, %v1161
        %v1196 = vadd.f32 %v1192, %v1162
        %v1197 = vadd.f32 %v1193, %v1163
        %v1198 = vadd.f32 %v1194, %v1164
        %1199 = vst.msk [vmem:[#allocation3] sm:$0xff] %vm267, %v1195
        %1200 = vst.msk [vmem:[#allocation3 + $0x8] sm:$0xff] %vm267, %v1196
        %1201 = vst.msk [vmem:[#allocation3 + $0x10] sm:$0xff] %vm267, %v1197
        %1202 = vst.msk [vmem:[#allocation3 + $0x18] sm:$0x3f] %vm1189, %v1198
        %p1203 = scmp.eq.s32.totalorder %s18, 1
        // Predicated region
        $region41: #{tpu_custom_call.1} parent=35 // pred_check
          %p1204 = pneg %p1203
        $region42: #{tpu_custom_call.1} parent=35 // pred_check_branch
          %1206 = sbr.rel (%p1204) target = $region44
        $region43: #{tpu_custom_call.1} parent=35 // pred_region
          %v1207 = vld [vmem:[%s2] sm:$0xff]
          %v1208 = vld [vmem:[%s2 + $0x8] sm:$0xff]
          %v1209 = vld [vmem:[#allocation2] sm:$0xff]
          %v1210 = vld [vmem:[#allocation2 + $0x8] sm:$0xff]
          %v1211 = vld [vmem:[#allocation2 + $0x10] sm:$0xff]
          %v1212 = vld [vmem:[#allocation2 + $0x18] sm:$0x3f]
          %v1214 = vsel %vm267, %v1209, 0
          %v1217 = vsel %vm267, %v1210, 0
          %v1220 = vsel %vm267, %v1211, 0
          %v1223 = vsel %vm267, %v1212, 0
          %1225 = vmatpush.msra.mxu0 0.0
          %1226 = vmatpush.msra.mxu0 0.0
          %1227 = vmatpush.msra.mxu0 0.0
          %1228 = vmatpush.msra.mxu0 0.0
          %1229 = vmatpush.msra.mxu0 0.0
          %1230 = vmatpush.msra.mxu0 0.0
          %1231 = vmatpush.msra.mxu0 0.0
          %1232 = vmatpush.msra.mxu0 0.0
          %1233 = vmatpush.msra.mxu0 0.0
          %1234 = vmatpush.msra.mxu0 0.0
          %1235 = vmatpush.msra.mxu0 0.0
          %1236 = vmatpush.msra.mxu0 0.0
          %1237 = vmatpush.msra.mxu0 0.0
          %1238 = vmatpush.msra.mxu0 0.0
          %1239 = vmatpush.msra.mxu0 %v1208
          %1240 = vmatpush.msra.mxu0 %v1207
          %1241 = vmatmul.f32.gmra.mxu0 %v1214
          %v1242 = vpop.f32.mrf.mxu0
          %v1243 = vadd.f32 0.0, %v1242
          %1244 = vmatmul.f32.gmra.mxu0 %v1217
          %v1245 = vpop.f32.mrf.mxu0
          %v1246 = vadd.f32 0.0, %v1245
          %1247 = vmatmul.f32.gmra.mxu0 %v1220
          %v1248 = vpop.f32.mrf.mxu0
          %v1249 = vadd.f32 0.0, %v1248
          %1250 = vmatmul.f32.gmra.mxu0 %v1223
          %v1251 = vpop.f32.mrf.mxu0
          %v1252 = vadd.f32 0.0, %v1251
          %1253 = vdwg.mxu0
          %v1254 = vld [vmem:[#allocation3] sm:$0xff]
          %v1255 = vld [vmem:[#allocation3 + $0x8] sm:$0xff]
          %v1256 = vld [vmem:[#allocation3 + $0x10] sm:$0xff]
          %v1257 = vld [vmem:[#allocation3 + $0x18] sm:$0x3f]
          %v1259 = vsel %vm267, %v1254, 0
          %v1262 = vsel %vm267, %v1255, 0
          %v1265 = vsel %vm267, %v1256, 0
          %v1268 = vsel %vm267, %v1257, 0
          %1270 = vmatpush.msra.mxu0 0.0
          %1271 = vmatpush.msra.mxu0 0.0
          %1272 = vmatpush.msra.mxu0 0.0
          %1273 = vmatpush.msra.mxu0 0.0
          %1274 = vmatpush.msra.mxu0 0.0
          %1275 = vmatpush.msra.mxu0 0.0
          %1276 = vmatpush.msra.mxu0 0.0
          %1277 = vmatpush.msra.mxu0 0.0
          %1278 = vmatpush.msra.mxu0 0.0
          %1279 = vmatpush.msra.mxu0 0.0
          %1280 = vmatpush.msra.mxu0 0.0
          %1281 = vmatpush.msra.mxu0 0.0
          %1282 = vmatpush.msra.mxu0 0.0
          %1283 = vmatpush.msra.mxu0 0.0
          %1284 = vmatpush.msra.mxu0 %v1208
          %1285 = vmatpush.msra.mxu0 %v1207
          %1286 = vmatmul.f32.gmra.mxu0 %v1259
          %v1287 = vpop.f32.mrf.mxu0
          %v1288 = vadd.f32 0.0, %v1287
          %1289 = vmatmul.f32.gmra.mxu0 %v1262
          %v1290 = vpop.f32.mrf.mxu0
          %v1291 = vadd.f32 0.0, %v1290
          %1292 = vmatmul.f32.gmra.mxu0 %v1265
          %v1293 = vpop.f32.mrf.mxu0
          %v1294 = vadd.f32 0.0, %v1293
          %1295 = vmatmul.f32.gmra.mxu0 %v1268
          %v1296 = vpop.f32.mrf.mxu0
          %v1297 = vadd.f32 0.0, %v1296
          %1298 = vdwg.mxu0
          %vm1299 = vcmp.gt.f32.partialorder %v1243, 0.0
          %vm1300 = vcmp.gt.f32.partialorder %v1246, 0.0
          %vm1301 = vcmp.gt.f32.partialorder %v1249, 0.0
          %vm1302 = vcmp.gt.f32.partialorder %v1252, 0.0
          %v1303 = vld [vmem:[%s3] sm:$0xff]
          %v1304 = vld [vmem:[%s3 + $0x8] sm:$0xff]
          %v1305 = vld [vmem:[%s3 + $0x10] sm:$0xff]
          %v1306 = vld [vmem:[%s3 + $0x18] sm:$0x3f]
          %v1307 = vmul.f32 %v1303, 0.6
          %v1308 = vmul.f32 %v1304, 0.6
          %v1309 = vmul.f32 %v1305, 0.6
          %v1310 = vmul.f32 %v1306, 0.6
          %v1311 = vmul.f32 %v1243, 0.4
          %v1312 = vmul.f32 %v1246, 0.4
          %v1313 = vmul.f32 %v1249, 0.4
          %v1314 = vmul.f32 %v1252, 0.4
          %v1315 = vadd.f32 %v1307, %v1311
          %v1316 = vadd.f32 %v1308, %v1312
          %v1317 = vadd.f32 %v1309, %v1313
          %v1318 = vadd.f32 %v1310, %v1314
          %v1319 = vsel %vm1299, %v1315, %v1303
          %v1320 = vsel %vm1300, %v1316, %v1304
          %v1321 = vsel %vm1301, %v1317, %v1305
          %v1322 = vsel %vm1302, %v1318, %v1306
          %vm1323 = vcmask 31744
          %1324 = vst.msk [vmem:[%s5] sm:$0xff] %vm1323, %v1319
          %1325 = vst.msk [vmem:[%s5 + $0x8] sm:$0xff] %vm1323, %v1320
          %1326 = vst.msk [vmem:[%s5 + $0x10] sm:$0xff] %vm1323, %v1321
          %vm1327 = vcmask 29696
          %1328 = vst.msk [vmem:[%s5 + $0x18] sm:$0x3f] %vm1327, %v1322
          %v1329 = vsel %vm1299, %v1315, 1.0
          %v1330 = vsel %vm1300, %v1316, 1.0
          %v1331 = vsel %vm1301, %v1317, 1.0
          %v1332 = vsel %vm1302, %v1318, 1.0
          %v1333 = vrcp.pop %v1329
          %v1334 = vmul.f32 %v1329, %v1333
          %v1335 = vsub.f32 1.0, %v1334
          %v1336 = vmul.f32 %v1333, %v1335
          %v1337 = vadd.f32 %v1333, %v1336
          %vm1338 = vweird.f32 %v1329
          %vm1339 = vweird.f32 %v1333
          %vm1340 = vmor %vm1338, %vm1339
          %v1341 = vsel %vm1340, %v1333, %v1337
          %v1342 = vand.u32 2147483647, %v1329
          %vm1343 = vcmp.eq.f32.partialorder %v1342, 8.507059e+37
          %v1344 = vand.u32 %v1329, 2147483648
          %v1345 = vor.u32 1.1754944e-38, %v1344
          %v1346 = vsel %vm1343, %v1345, %v1341
          %v1347 = vmul.f32 64.0, %v1346
          %v1348 = vrcp.pop %v1330
          %v1349 = vmul.f32 %v1330, %v1348
          %v1350 = vsub.f32 1.0, %v1349
          %v1351 = vmul.f32 %v1348, %v1350
          %v1352 = vadd.f32 %v1348, %v1351
          %vm1353 = vweird.f32 %v1330
          %vm1354 = vweird.f32 %v1348
          %vm1355 = vmor %vm1353, %vm1354
          %v1356 = vsel %vm1355, %v1348, %v1352
          %v1357 = vand.u32 2147483647, %v1330
          %vm1358 = vcmp.eq.f32.partialorder %v1357, 8.507059e+37
          %v1359 = vand.u32 %v1330, 2147483648
          %v1360 = vor.u32 1.1754944e-38, %v1359
          %v1361 = vsel %vm1358, %v1360, %v1356
          %v1362 = vmul.f32 64.0, %v1361
          %v1363 = vrcp.pop %v1331
          %v1364 = vmul.f32 %v1331, %v1363
          %v1365 = vsub.f32 1.0, %v1364
          %v1366 = vmul.f32 %v1363, %v1365
          %v1367 = vadd.f32 %v1363, %v1366
          %vm1368 = vweird.f32 %v1331
          %vm1369 = vweird.f32 %v1363
          %vm1370 = vmor %vm1368, %vm1369
          %v1371 = vsel %vm1370, %v1363, %v1367
          %v1372 = vand.u32 2147483647, %v1331
          %vm1373 = vcmp.eq.f32.partialorder %v1372, 8.507059e+37
          %v1374 = vand.u32 %v1331, 2147483648
          %v1375 = vor.u32 1.1754944e-38, %v1374
          %v1376 = vsel %vm1373, %v1375, %v1371
          %v1377 = vmul.f32 64.0, %v1376
          %v1378 = vrcp.pop %v1332
          %v1379 = vmul.f32 %v1332, %v1378
          %v1380 = vsub.f32 1.0, %v1379
          %v1381 = vmul.f32 %v1378, %v1380
          %v1382 = vadd.f32 %v1378, %v1381
          %vm1383 = vweird.f32 %v1332
          %vm1384 = vweird.f32 %v1378
          %vm1385 = vmor %vm1383, %vm1384
          %v1386 = vsel %vm1385, %v1378, %v1382
          %v1387 = vand.u32 2147483647, %v1332
          %vm1388 = vcmp.eq.f32.partialorder %v1387, 8.507059e+37
          %v1389 = vand.u32 %v1332, 2147483648
          %v1390 = vor.u32 1.1754944e-38, %v1389
          %v1391 = vsel %vm1388, %v1390, %v1386
          %v1392 = vmul.f32 64.0, %v1391
          %v1393 = vsel %vm1299, %v1347, 0.0
          %v1394 = vsel %vm1300, %v1362, 0.0
          %v1395 = vsel %vm1301, %v1377, 0.0
          %v1396 = vsel %vm1302, %v1392, 0.0
          %v1397 = vsel %vm1299, 1, 0
          %v1398 = vsel %vm1300, 1, 0
          %v1399 = vsel %vm1301, 1, 0
          %v1400 = vsel %vm1302, 1, 0
          %v1401 = vcvt.s32.f32 %v1397
          %v1402 = vcvt.s32.f32 %v1398
          %v1403 = vcvt.s32.f32 %v1399
          %v1404 = vcvt.s32.f32 %v1400
          %v1405 = vsel %vm1323, %v1401, 0.0
          %v1406 = vsel %vm1323, %v1402, 0.0
          %v1407 = vadd.f32 %v1405, %v1406
          %v1408 = vsel %vm1323, %v1403, 0.0
          %v1409 = vadd.f32 %v1407, %v1408
          %v1410 = vsel %vm1327, %v1404, 0.0
          %v1411 = vadd.f32 %v1409, %v1410
          %v1412 = vrot.slane %v1411, 4
          %v1413 = vadd.f32 %v1411, %v1412
          %v1414 = vrot.slane %v1413, 2
          %v1415 = vadd.f32 %v1413, %v1414
          %v1416 = vrot.slane %v1415, 1
          %v1417 = vadd.f32 %v1415, %v1416
          %vm1418 = vcmp.gt.f32.partialorder %v1417, 0.0
          %v1419 = vrcp.pop %v1417
          %v1420 = vmul.f32 %v1417, %v1419
          %v1421 = vsub.f32 1.0, %v1420
          %v1422 = vmul.f32 %v1419, %v1421
          %v1423 = vadd.f32 %v1419, %v1422
          %vm1424 = vweird.f32 %v1417
          %vm1425 = vweird.f32 %v1419
          %vm1426 = vmor %vm1424, %vm1425
          %v1427 = vsel %vm1426, %v1419, %v1423
          %v1428 = vand.u32 2147483647, %v1417
          %vm1429 = vcmp.eq.f32.partialorder %v1428, 8.507059e+37
          %v1430 = vand.u32 %v1417, 2147483648
          %v1431 = vor.u32 1.1754944e-38, %v1430
          %v1432 = vsel %vm1429, %v1431, %v1427
          %v1433 = vmul.f32 1.0, %v1432
          %v1434 = vsel %vm1418, %v1433, 1.0
          %v1435 = vmul.f32 %v1288, %v1393
          %v1436 = vmul.f32 %v1291, %v1394
          %v1437 = vmul.f32 %v1294, %v1395
          %v1438 = vmul.f32 %v1297, %v1396
          %v1439 = vmul.f32 %v1435, %v1434
          %v1440 = vmul.f32 %v1436, %v1434
          %v1441 = vmul.f32 %v1437, %v1434
          %v1442 = vmul.f32 %v1438, %v1434
          %v1443 = vsel %vm1323, %v1439, 0.0
          %v1444 = vsel %vm1323, %v1440, 0.0
          %v1445 = vadd.f32 %v1443, %v1444
          %v1446 = vsel %vm1323, %v1441, 0.0
          %v1447 = vadd.f32 %v1445, %v1446
          %v1448 = vsel %vm1327, %v1442, 0.0
          %v1449 = vadd.f32 %v1447, %v1448
          %v1450 = vrot.slane %v1449, 4
          %v1451 = vadd.f32 %v1449, %v1450
          %v1452 = vrot.slane %v1451, 2
          %v1453 = vadd.f32 %v1451, %v1452
          %v1454 = vrot.slane %v1453, 1
          %v1455 = vadd.f32 %v1453, %v1454
          %v1456 = vsel %vm1323, %v1455, 0.0
          %1457 = vadd.xlane.f32.xlu0 %v1456
          %v1458 = vpop.xlane.xlu0 %1457
          %v1459 = vmul.f32 %v1458, 0.00390625
          %vm1460 = vcmask 0
          %1461 = vst.msk [vmem:[#allocation4] sm:$0x1] %vm1460, %v1459
        $region44: #{tpu_custom_call.1} parent=35 // pred_fallthru
          _
        // Predicated region
        $region45: #{tpu_custom_call.1} parent=35 // pred_check
          %p1462 = pneg %p125
        $region46: #{tpu_custom_call.1} parent=35 // pred_check_branch
          %1464 = sbr.rel (%p1462) target = $region48
        $region47: #{tpu_custom_call.1} parent=35 // pred_region
          %1466 = vsyncadd [#allocation5], 0
          %s1468 = sshll.u32 [#allocation4], 4
          %s1469 = int_to_ptr.vmem [resolvable:$true] %s1468
          %s1470 = sshll.u32 %s4, 4
          %s1471 = int_to_ptr.hbm [resolvable:$true] %s1470
          %1473 = dma.vmem_to_hbm [thread:$0]  %s1469, 16, %s1471, [#allocation5]
        $region48: #{tpu_custom_call.1} parent=35 // pred_fallthru
          _
        // Predicated region
        $region49: #{tpu_custom_call.1} parent=35 // pred_check
          %p1474 = pneg %p146
        $region50: #{tpu_custom_call.1} parent=35 // pred_check_branch
          %1476 = sbr.rel (%p1474) target = $region52
        $region51: #{tpu_custom_call.1} parent=35 // pred_region
          _
        $region52: #{tpu_custom_call.1} parent=35 // pred_fallthru
          _
        // Predicated region
        $region53: #{tpu_custom_call.1} parent=35 // pred_check
          %p1477 = pneg %p125
        $region54: #{tpu_custom_call.1} parent=35 // pred_check_branch
          %1479 = sbr.rel (%p1477) target = $region56
        $region55: #{tpu_custom_call.1} parent=35 // pred_region
          %1481 = dma.done [#allocation5], 16
        $region56: #{tpu_custom_call.1} parent=35 // pred_fallthru
          _
        // Predicated region
        $region57: #{tpu_custom_call.1} parent=35 // pred_check
          %p1482 = pneg %p146
        $region58: #{tpu_custom_call.1} parent=35 // pred_check_branch
          %1484 = sbr.rel (%p1482) target = $region60
        $region59: #{tpu_custom_call.1} parent=35 // pred_region
          _
        $region60: #{tpu_custom_call.1} parent=35 // pred_fallthru
          _
      $region36: #{tpu_custom_call.1} parent=5 // pred_fallthru
        _
      %p1485 = scmp.le.s32.totalorder 2, %s13
      // Predicated region
      $region61: #{tpu_custom_call.1} parent=5 // pred_check
        %p1486 = pneg %p1485
      $region62: #{tpu_custom_call.1} parent=5 // pred_check_branch
        %1488 = sbr.rel (%p1486) target = $region64
      $region63: #{tpu_custom_call.1} parent=5 // pred_region
        %s1489 = ssub.s32 %s13, 2
      $region64: #{tpu_custom_call.1} parent=5 // pred_fallthru
        _
    $region6: #{tpu_custom_call.1} parent=1 // loop_footer
      %s17 = sadd.s32 1, %s13
    $region7: #{tpu_custom_call.1} parent=1 // loop_footer_branch
      %12 = sbr.rel target = $region3
    $region8: #{tpu_custom_call.1} parent=1 // loop_exit
      _
    %1490 = vsyncpa [#allocation5], 1
    %s1491 = scalar_lea.sflag [#allocation5], 1
    %1492 = vsyncpa %s1491, 1

</llo_original>
